<compile_context>
chip_gen: v5e
topology: v5e:2x2
jax: 0.10.0
libtpu: 0.0.40
codegen_flags: <defaults>
</compile_context>

<pallas_src>
import functools
import math

import numpy as np
import jax
import jax.numpy as jnp
from jax import lax
from jax.experimental import pallas as pl
from jax.experimental.pallas import tpu as pltpu


def _attention_kernel(hs_ref, ehs_ref,
                      wq_ref, bq_ref, wk_ref, bk_ref, wv_ref, bv_ref,
                      mask_ref,
                      ctx_ref, *out_refs,
                      num_heads, head_dim, with_probs, use_bf16):
    """One grid step = (batch b, query tile qi).

    Kernel-visible block shapes (leading batch dim squeezed by BlockSpec):
      hs_ref (TQ, H)   ehs_ref (Lk, He)   mask_ref (1, Lk)
      wq (H, A)  wk/wv (He, A)  biases (1, A)        A = nH * dh
      ctx_ref (TQ, A)  probs_ref (nH, TQ, Lk) [optional]
      key_ref / val_ref (Lk, A) -- lane-dense, resident across the q-tile axis
    """
    if with_probs:
        probs_ref, key_ref, val_ref = out_refs
    else:
        key_ref, val_ref = out_refs

    nH, dh = num_heads, head_dim
    mm_dtype = jnp.bfloat16 if use_bf16 else jnp.float32

    def proj(x, w_ref, b_ref):
        lhs = x.astype(mm_dtype)
        rhs = w_ref[...].astype(mm_dtype)
        return jnp.dot(lhs, rhs, preferred_element_type=jnp.float32) + b_ref[...]

    # --- K / V projections: once per batch.  The q-tile axis is "arbitrary"
    # (sequential) and key_ref/val_ref have a constant block index along it,
    # so the blocks stay resident; later q steps read them back. ---
    @pl.when(pl.program_id(1) == 0)
    def _project_kv():
        ehs = ehs_ref[...]
        key_ref[...] = proj(ehs, wk_ref, bk_ref).astype(key_ref.dtype)
        val_ref[...] = proj(ehs, wv_ref, bv_ref).astype(val_ref.dtype)

    # --- Q projection for this tile, all heads fused (lane-dense N = A). ---
    q = proj(hs_ref[...], wq_ref, bq_ref)
    q = q * jnp.float32(1.0 / math.sqrt(dh))   # fold 1/sqrt(dh) into Q

    q_mm = q.astype(mm_dtype)
    k_mm = key_ref[...].astype(mm_dtype)       # (Lk, A), resident in VMEM
    v_mm = val_ref[...].astype(mm_dtype)
    mask = mask_ref[...].astype(jnp.float32)   # (1, Lk), broadcasts over TQ

    # --- per-head attention: heads are static lane slices; only one (TQ, Lk)
    # f32 score tile is live at a time. ---
    ctx_parts = []
    for h in range(nH):
        lo = h * dh
        q_h = q_mm[:, lo:lo + dh]
        k_h = k_mm[:, lo:lo + dh]
        v_h = v_mm[:, lo:lo + dh]
        s = lax.dot_general(q_h, k_h, (((1,), (1,)), ((), ())),
                            preferred_element_type=jnp.float32)      # (TQ, Lk)
        s = s + mask
        m = jnp.max(s, axis=-1, keepdims=True)
        e = jnp.exp(s - m)
        denom = jnp.sum(e, axis=-1, keepdims=True)
        p = e * pl.reciprocal(denom, approx=True)                    # softmax
        if with_probs:
            probs_ref[h] = p.astype(probs_ref.dtype)
        # dropout is identity at inference; head_mask is None.
        ctx_parts.append(jnp.dot(p.astype(mm_dtype), v_h,
                                 preferred_element_type=jnp.float32))  # (TQ, dh)

    # Single lane-dense store, already in the final (Lq, nH*dh) layout.
    ctx_ref[...] = jnp.concatenate(ctx_parts, axis=-1).astype(ctx_ref.dtype)


def ureader_abstractor_mha(hidden_states, encoder_hidden_states,
                           wq, bq, wk, bk, wv, bv,
                           encoder_attention_mask,
                           num_heads, head_dim,
                           *, output_attentions=True,
                           use_bf16_matmuls=False,
                           q_tile=256):
    """Fused multi-head cross-attention.

    hidden_states:          (B, Lq, H)
    encoder_hidden_states:  (B, Lk, He)
    wq: (H,  A)  bq: (A,)      A = num_heads * head_dim
    wk: (He, A)  bk: (A,)
    wv: (He, A)  bv: (A,)
    encoder_attention_mask: additive key mask, shape (B, Lk) / (B,1,Lk) /
                            HF-style (B,1,1,Lk), or None.

    Returns:
      output_attentions=True : (context (B,Lq,A), probs (B,nH,Lq,Lk),
                                (key (B,nH,Lk,dh), value (B,nH,Lk,dh)))
      output_attentions=False: (context, (key, value))

    q_tile: query tile size (multiple of 8).  256 is a good default on
    v5e/v6e; use ~128 on v7x (64 MiB VMEM per TensorCore).
    """
    B, Lq, H = hidden_states.shape
    _, Lk, He = encoder_hidden_states.shape
    nH, dh = num_heads, head_dim
    A = nH * dh
    io_dtype = hidden_states.dtype

    TQ = Lq if Lq <= q_tile else q_tile
    nQ = pl.cdiv(Lq, TQ)

    bq2 = bq.reshape(1, A)
    bk2 = bk.reshape(1, A)
    bv2 = bv.reshape(1, A)

    # Additive mask kept (B, 1, Lk); the broadcast along Lq happens in-kernel
    # (saves Lq x mask HBM traffic per batch).
    if encoder_attention_mask is None:
        mask3 = jnp.zeros((B, 1, Lk), jnp.float32)
    else:
        # TODO(synk): per-query (B, Lq, Lk) additive masks would need an
        # Lq-tiled mask BlockSpec; only key-position masks are supported here.
        mask3 = jnp.asarray(encoder_attention_mask, jnp.float32).reshape(B, 1, Lk)

    def _nbytes(shape, dtype):
        return math.prod(shape) * np.dtype(dtype).itemsize

    # VMEM estimate from the actual block sizes (double-buffered where Pallas
    # double-buffers), with 1.5x headroom; also lifts v5e's 16 MiB default.
    est = 0
    est += 2 * _nbytes((TQ, H), io_dtype)             # hidden_states tile
    est += 2 * _nbytes((Lk, He), io_dtype)            # encoder_hidden_states
    est += (_nbytes((H, A), io_dtype) + 2 * _nbytes((He, A), io_dtype)
            + 3 * _nbytes((1, A), io_dtype))          # weights/biases (single-buffered)
    est += 2 * _nbytes((1, Lk), jnp.float32)          # mask
    est += 2 * _nbytes((TQ, A), io_dtype)             # context tile
    if output_attentions:
        est += 2 * _nbytes((nH, TQ, Lk), io_dtype)    # probs tile
    est += 4 * _nbytes((Lk, A), io_dtype)             # key + value blocks
    est += 4 * _nbytes((TQ, A), jnp.float32)          # q / ctx temporaries
    est += 2 * _nbytes((Lk, A), jnp.float32)          # k/v reads
    est += 4 * _nbytes((TQ, Lk), jnp.float32)         # per-head score tiles
    vmem_limit = int(min(max(est * 3 // 2, 32 * 1024 * 1024), 96 * 1024 * 1024))

    kernel = functools.partial(
        _attention_kernel, num_heads=nH, head_dim=dh,
        with_probs=output_attentions, use_bf16=use_bf16_matmuls)

    def _build(single_buffer_consts):
        def const_spec(shape):
            kw = {}
            if single_buffer_consts:
                # Constant-index inputs never re-DMA; don't reserve 2x VMEM.
                kw["pipeline_mode"] = pl.Buffered(buffer_count=1)
            return pl.BlockSpec(shape, lambda b, qi: (0,) * len(shape), **kw)

        in_specs = [
            pl.BlockSpec((None, TQ, H), lambda b, qi: (b, qi, 0)),    # hidden_states
            pl.BlockSpec((None, Lk, He), lambda b, qi: (b, 0, 0)),    # encoder_hidden_states
            const_spec((H, A)),  const_spec((1, A)),                  # wq, bq
            const_spec((He, A)), const_spec((1, A)),                  # wk, bk
            const_spec((He, A)), const_spec((1, A)),                  # wv, bv
            pl.BlockSpec((None, 1, Lk), lambda b, qi: (b, 0, 0)),     # additive mask
        ]

        out_specs = [pl.BlockSpec((None, TQ, A), lambda b, qi: (b, qi, 0))]
        out_shapes = [jax.ShapeDtypeStruct((B, Lq, A), io_dtype)]
        if output_attentions:
            out_specs.append(
                pl.BlockSpec((None, nH, TQ, Lk), lambda b, qi: (b, 0, qi, 0)))
            out_shapes.append(jax.ShapeDtypeStruct((B, nH, Lq, Lk), io_dtype))
        # key / value emitted lane-dense (B, Lk, nH*dh); reshaped to the torch
        # (B, nH, Lk, dh) view in the wrapper below.
        out_specs.append(pl.BlockSpec((None, Lk, A), lambda b, qi: (b, 0, 0)))
        out_specs.append(pl.BlockSpec((None, Lk, A), lambda b, qi: (b, 0, 0)))
        out_shapes += [jax.ShapeDtypeStruct((B, Lk, A), io_dtype)] * 2

        grid_spec = pltpu.PrefetchScalarGridSpec(
            num_scalar_prefetch=0,
            grid=(B, nQ),
            in_specs=in_specs,
            out_specs=tuple(out_specs))

        return pl.pallas_call(
            kernel,
            out_shape=tuple(out_shapes),
            grid_spec=grid_spec,
            compiler_params=pltpu.CompilerParams(
                # Batch axis parallel (megacore / v7x dual-TC); the q-tile axis
                # must stay "arbitrary" because key/value blocks revisit it.
                dimension_semantics=("parallel", "arbitrary"),
                vmem_limit_bytes=vmem_limit))

    args = (hidden_states, encoder_hidden_states,
            wq, bq2, wk, bk2, wv, bv2, mask3)
    try:
        results = _build(True)(*args)
    except Exception:
        # pl.Buffered(1) not supported on this jax/libtpu combo: fall back to
        # default double-buffered constant blocks.
        results = _build(False)(*args)

    if output_attentions:
        context, probs, k_dense, v_dense = results
    else:
        context, k_dense, v_dense = results
        probs = None

    key_layer = k_dense.reshape(B, Lk, nH, dh).transpose(0, 2, 1, 3)
    value_layer = v_dense.reshape(B, Lk, nH, dh).transpose(0, 2, 1, 3)
    past_key_value = (key_layer, value_layer)

    if output_attentions:
        return context, probs, past_key_value
    return context, past_key_value


def _reference(hidden_states, encoder_hidden_states,
               wq, bq, wk, bk, wv, bv, mask_rows, num_heads, head_dim):
    """Pure-JAX reference mirroring the PyTorch forward (HIGHEST precision)."""
    B, Lq, _ = hidden_states.shape
    _, Lk, _ = encoder_hidden_states.shape
    A = num_heads * head_dim
    prec = lax.Precision.HIGHEST

    def split_heads(x):
        return jnp.transpose(
            x.reshape(x.shape[0], x.shape[1], num_heads, head_dim), (0, 2, 1, 3))

    q = split_heads(jnp.dot(hidden_states, wq, precision=prec) + bq)
    k = split_heads(jnp.dot(encoder_hidden_states, wk, precision=prec) + bk)
    v = split_heads(jnp.dot(encoder_hidden_states, wv, precision=prec) + bv)

    scores = jnp.einsum('bnqd,bnkd->bnqk', q, k, precision=prec) / math.sqrt(head_dim)
    scores = scores + mask_rows[:, None, None, :]
    probs = jax.nn.softmax(scores, axis=-1)
    ctx = jnp.einsum('bnqk,bnkd->bnqd', probs, v, precision=prec)
    ctx = jnp.transpose(ctx, (0, 2, 1, 3)).reshape(B, Lq, A)
    return ctx, probs, (k, v)


if __name__ == "__main__":
    # Small, forward-consistent shapes.
    B, Lq, Lk = 2, 8, 16
    num_heads, head_dim = 4, 8
    hidden_size = num_heads * head_dim          # 32
    encoder_hidden_size = 48

    key = jax.random.PRNGKey(0)
    ks = jax.random.split(key, 8)

    hidden_states = jax.random.normal(ks[0], (B, Lq, hidden_size), jnp.float32)
    encoder_hidden_states = jax.random.normal(
        ks[1], (B, Lk, encoder_hidden_size), jnp.float32)

    # Deterministic parameters (fused nn.Linear layout: (in, out) / (out,)).
    wq = 0.05 * jax.random.normal(ks[2], (hidden_size, hidden_size), jnp.float32)
    bq = 0.01 * jax.random.normal(ks[3], (hidden_size,), jnp.float32)
    wk = 0.05 * jax.random.normal(ks[4], (encoder_hidden_size, hidden_size), jnp.float32)
    bk = 0.01 * jax.random.normal(ks[5], (hidden_size,), jnp.float32)
    wv = 0.05 * jax.random.normal(ks[6], (encoder_hidden_size, hidden_size), jnp.float32)
    bv = 0.01 * jax.random.normal(ks[7], (hidden_size,), jnp.float32)

    # Additive key-position mask: last 4 key positions of batch 1 masked out.
    mask_rows = jnp.zeros((B, Lk), jnp.float32).at[1, Lk - 4:].set(-1e9)

    # --- f32 path, with attention probs (output_attentions=True) ---
    context, probs, (k_layer, v_layer) = ureader_abstractor_mha(
        hidden_states, encoder_hidden_states,
        wq, bq, wk, bk, wv, bv, mask_rows, num_heads, head_dim,
        output_attentions=True)
    jax.block_until_ready((context, probs, k_layer, v_layer))

    ref_ctx, ref_probs, (ref_k, ref_v) = _reference(
        hidden_states, encoder_hidden_states,
        wq, bq, wk, bk, wv, bv, mask_rows, num_heads, head_dim)

    assert jnp.allclose(k_layer, ref_k, atol=1e-4, rtol=1e-4), "key mismatch"
    assert jnp.allclose(v_layer, ref_v, atol=1e-4, rtol=1e-4), "value mismatch"
    # approx-reciprocal softmax normalization => ~1e-4 relative error budget.
    assert jnp.allclose(probs, ref_probs, atol=2e-3, rtol=2e-3), "probs mismatch"
    assert jnp.allclose(context, ref_ctx, atol=2e-3, rtol=2e-3), "context mismatch"

    # --- bf16-operand MXU path (fast path on v6e/v7x), probs writeback off ---
    context_fast, (k_fast, v_fast) = ureader_abstractor_mha(
        hidden_states, encoder_hidden_states,
        wq, bq, wk, bk, wv, bv, mask_rows, num_heads, head_dim,
        output_attentions=False, use_bf16_matmuls=True)
    jax.block_until_ready((context_fast, k_fast, v_fast))
    assert jnp.allclose(context_fast, ref_ctx, atol=3e-2, rtol=3e-2), "bf16 context mismatch"
    assert jnp.allclose(k_fast, ref_k, atol=3e-2, rtol=3e-2), "bf16 key mismatch"

    # TODO(synk): dropout (identity at inference), head_mask, and the
    # save_attention / attn-gradient hook bookkeeping are not represented in-kernel.

    print("KERNEL_OK")
</pallas_src>

<mosaic_0001>
module attributes {stable_mosaic.version = 11 : i64} {
  func.func @_attention_kernel(%arg0: i32, %arg1: i32, %arg2: memref<1x8x32xf32, #tpu.memory_space<vmem>>, %arg3: memref<1x16x48xf32, #tpu.memory_space<vmem>>, %arg4: memref<32x32xf32, #tpu.memory_space<vmem>>, %arg5: memref<1x32xf32, #tpu.memory_space<vmem>>, %arg6: memref<48x32xf32, #tpu.memory_space<vmem>>, %arg7: memref<1x32xf32, #tpu.memory_space<vmem>>, %arg8: memref<48x32xf32, #tpu.memory_space<vmem>>, %arg9: memref<1x32xf32, #tpu.memory_space<vmem>>, %arg10: memref<1x1x16xf32, #tpu.memory_space<vmem>>, %arg11: memref<1x8x32xf32, #tpu.memory_space<vmem>>, %arg12: memref<1x4x8x16xf32, #tpu.memory_space<vmem>>, %arg13: memref<1x16x32xf32, #tpu.memory_space<vmem>>, %arg14: memref<1x16x32xf32, #tpu.memory_space<vmem>>) attributes {dimension_semantics = [#tpu.dimension_semantics<parallel>, #tpu.dimension_semantics<arbitrary>], iteration_bounds = array<i64: 2, 1>, scalar_prefetch = 0 : i64, scratch_operands = 0 : i64, tpu.core_type = #tpu.core_type<tc>, window_params = [{transform_indices = @transform_0, window_bounds = array<i64: 1, 8, 32>}, {transform_indices = @transform_1, window_bounds = array<i64: 1, 16, 48>}, {pipeline_mode = #tpu.pipeline_mode<synchronous>, transform_indices = @transform_2, window_bounds = array<i64: 32, 32>}, {pipeline_mode = #tpu.pipeline_mode<synchronous>, transform_indices = @transform_3, window_bounds = array<i64: 1, 32>}, {pipeline_mode = #tpu.pipeline_mode<synchronous>, transform_indices = @transform_4, window_bounds = array<i64: 48, 32>}, {pipeline_mode = #tpu.pipeline_mode<synchronous>, transform_indices = @transform_5, window_bounds = array<i64: 1, 32>}, {pipeline_mode = #tpu.pipeline_mode<synchronous>, transform_indices = @transform_6, window_bounds = array<i64: 48, 32>}, {pipeline_mode = #tpu.pipeline_mode<synchronous>, transform_indices = @transform_7, window_bounds = array<i64: 1, 32>}, {transform_indices = @transform_8, window_bounds = array<i64: 1, 1, 16>}, {transform_indices = @transform_9, window_bounds = array<i64: 1, 8, 32>}, {transform_indices = @transform_10, window_bounds = array<i64: 1, 4, 8, 16>}, {transform_indices = @transform_11, window_bounds = array<i64: 1, 16, 32>}, {transform_indices = @transform_12, window_bounds = array<i64: 1, 16, 32>}]} {
    %c0_i32 = arith.constant 0 : i32
    %0 = arith.cmpi eq, %arg1, %c0_i32 : i32
    %1 = arith.extui %0 : i1 to i32
    %c0_i32_0 = arith.constant 0 : i32
    %2 = arith.cmpi ne, %1, %c0_i32_0 : i32
    scf.if %2 {
      %c0_49 = arith.constant 0 : index
      %c0_50 = arith.constant 0 : index
      %c0_51 = arith.constant 0 : index
      %102 = vector.load %arg3[%c0_49, %c0_50, %c0_51] : memref<1x16x48xf32, #tpu.memory_space<vmem>>, vector<1x16x48xf32>
      %103 = vector.shape_cast %102 : vector<1x16x48xf32> to vector<16x48xf32>
      %c0_52 = arith.constant 0 : index
      %c0_53 = arith.constant 0 : index
      %104 = vector.load %arg6[%c0_52, %c0_53] : memref<48x32xf32, #tpu.memory_space<vmem>>, vector<48x32xf32>
      %cst_54 = arith.constant dense<0.000000e+00> : vector<16x32xf32>
      %105 = tpu.matmul %103, %104, %cst_54 {dimension_numbers = #tpu.dot_dimension_numbers<[1], [0], [0], [1], [0, 0, 1, 1], [], []>} : vector<16x48xf32>, vector<48x32xf32>, vector<16x32xf32> -> vector<16x32xf32>
      %c0_55 = arith.constant 0 : index
      %c0_56 = arith.constant 0 : index
      %106 = vector.load %arg7[%c0_55, %c0_56] : memref<1x32xf32, #tpu.memory_space<vmem>>, vector<1x32xf32>
      %107 = vector.broadcast %106 : vector<1x32xf32> to vector<16x32xf32>
      %108 = arith.addf %105, %107 : vector<16x32xf32>
      %c0_57 = arith.constant 0 : index
      %c0_58 = arith.constant 0 : index
      %c0_59 = arith.constant 0 : index
      %109 = vector.load %arg13[%c0_57, %c0_58, %c0_59] : memref<1x16x32xf32, #tpu.memory_space<vmem>>, vector<1x16x32xf32>
      %110 = vector.shape_cast %109 : vector<1x16x32xf32> to vector<16x32xf32>
      %111 = vector.shape_cast %108 : vector<16x32xf32> to vector<1x16x32xf32>
      tpu.vector_store %arg13[%c0_57, %c0_58, %c0_59], %111 {strides = array<i32>} : memref<1x16x32xf32, #tpu.memory_space<vmem>>, vector<1x16x32xf32>,
      %c0_60 = arith.constant 0 : index
      %c0_61 = arith.constant 0 : index
      %112 = vector.load %arg8[%c0_60, %c0_61] : memref<48x32xf32, #tpu.memory_space<vmem>>, vector<48x32xf32>
      %cst_62 = arith.constant dense<0.000000e+00> : vector<16x32xf32>
      %113 = tpu.matmul %103, %112, %cst_62 {dimension_numbers = #tpu.dot_dimension_numbers<[1], [0], [0], [1], [0, 0, 1, 1], [], []>} : vector<16x48xf32>, vector<48x32xf32>, vector<16x32xf32> -> vector<16x32xf32>
      %c0_63 = arith.constant 0 : index
      %c0_64 = arith.constant 0 : index
      %114 = vector.load %arg9[%c0_63, %c0_64] : memref<1x32xf32, #tpu.memory_space<vmem>>, vector<1x32xf32>
      %115 = vector.broadcast %114 : vector<1x32xf32> to vector<16x32xf32>
      %116 = arith.addf %113, %115 : vector<16x32xf32>
      %c0_65 = arith.constant 0 : index
      %c0_66 = arith.constant 0 : index
      %c0_67 = arith.constant 0 : index
      %117 = vector.load %arg14[%c0_65, %c0_66, %c0_67] : memref<1x16x32xf32, #tpu.memory_space<vmem>>, vector<1x16x32xf32>
      %118 = vector.shape_cast %117 : vector<1x16x32xf32> to vector<16x32xf32>
      %119 = vector.shape_cast %116 : vector<16x32xf32> to vector<1x16x32xf32>
      tpu.vector_store %arg14[%c0_65, %c0_66, %c0_67], %119 {strides = array<i32>} : memref<1x16x32xf32, #tpu.memory_space<vmem>>, vector<1x16x32xf32>,
    } else {
    }
    %c0 = arith.constant 0 : index
    %c0_1 = arith.constant 0 : index
    %c0_2 = arith.constant 0 : index
    %3 = vector.load %arg2[%c0, %c0_1, %c0_2] : memref<1x8x32xf32, #tpu.memory_space<vmem>>, vector<1x8x32xf32>
    %4 = vector.shape_cast %3 : vector<1x8x32xf32> to vector<8x32xf32>
    %c0_3 = arith.constant 0 : index
    %c0_4 = arith.constant 0 : index
    %5 = vector.load %arg4[%c0_3, %c0_4] : memref<32x32xf32, #tpu.memory_space<vmem>>, vector<32x32xf32>
    %cst = arith.constant dense<0.000000e+00> : vector<8x32xf32>
    %6 = tpu.matmul %4, %5, %cst {dimension_numbers = #tpu.dot_dimension_numbers<[1], [0], [0], [1], [0, 0, 1, 1], [], []>} : vector<8x32xf32>, vector<32x32xf32>, vector<8x32xf32> -> vector<8x32xf32>
    %c0_5 = arith.constant 0 : index
    %c0_6 = arith.constant 0 : index
    %7 = vector.load %arg5[%c0_5, %c0_6] : memref<1x32xf32, #tpu.memory_space<vmem>>, vector<1x32xf32>
    %8 = vector.broadcast %7 : vector<1x32xf32> to vector<8x32xf32>
    %9 = arith.addf %6, %8 : vector<8x32xf32>
    %cst_7 = arith.constant 0.353553385 : f32
    %10 = vector.broadcast %cst_7 : f32 to vector<8x32xf32>
    %11 = arith.mulf %9, %10 : vector<8x32xf32>
    %c0_8 = arith.constant 0 : index
    %c0_9 = arith.constant 0 : index
    %c0_10 = arith.constant 0 : index
    %12 = vector.load %arg13[%c0_8, %c0_9, %c0_10] : memref<1x16x32xf32, #tpu.memory_space<vmem>>, vector<1x16x32xf32>
    %13 = vector.shape_cast %12 : vector<1x16x32xf32> to vector<16x32xf32>
    %c0_11 = arith.constant 0 : index
    %c0_12 = arith.constant 0 : index
    %c0_13 = arith.constant 0 : index
    %14 = vector.load %arg14[%c0_11, %c0_12, %c0_13] : memref<1x16x32xf32, #tpu.memory_space<vmem>>, vector<1x16x32xf32>
    %15 = vector.shape_cast %14 : vector<1x16x32xf32> to vector<16x32xf32>
    %c0_14 = arith.constant 0 : index
    %c0_15 = arith.constant 0 : index
    %c0_16 = arith.constant 0 : index
    %16 = vector.load %arg10[%c0_14, %c0_15, %c0_16] : memref<1x1x16xf32, #tpu.memory_space<vmem>>, vector<1x1x16xf32>
    %17 = vector.shape_cast %16 : vector<1x1x16xf32> to vector<1x16xf32>
    %18 = vector.extract_strided_slice %11 {offsets = [0, 0], sizes = [8, 8], strides = [1, 1]} : vector<8x32xf32> to vector<8x8xf32>
    %19 = vector.extract_strided_slice %13 {offsets = [0, 0], sizes = [16, 8], strides = [1, 1]} : vector<16x32xf32> to vector<16x8xf32>
    %20 = vector.extract_strided_slice %15 {offsets = [0, 0], sizes = [16, 8], strides = [1, 1]} : vector<16x32xf32> to vector<16x8xf32>
    %cst_17 = arith.constant dense<0.000000e+00> : vector<8x16xf32>
    %21 = tpu.matmul %18, %19, %cst_17 {dimension_numbers = #tpu.dot_dimension_numbers<[1], [1], [0], [0], [0, 0, 1, 0], [], []>} : vector<8x8xf32>, vector<16x8xf32>, vector<8x16xf32> -> vector<8x16xf32>
    %22 = vector.broadcast %17 : vector<1x16xf32> to vector<8x16xf32>
    %23 = arith.addf %21, %22 : vector<8x16xf32>
    %cst_18 = arith.constant dense<0xFF800000> : vector<8xf32>
    %24 = vector.multi_reduction <maximumf>, %23, %cst_18 [1] : vector<8x16xf32> to vector<8xf32>
    %25 = vector.shape_cast %24 : vector<8xf32> to vector<8x1xf32>
    %26 = vector.broadcast %25 : vector<8x1xf32> to vector<8x16xf32>
    %27 = arith.subf %23, %26 : vector<8x16xf32>
    %28 = math.exp %27 : vector<8x16xf32>
    %cst_19 = arith.constant dense<0.000000e+00> : vector<8xf32>
    %29 = vector.multi_reduction <add>, %28, %cst_19 [1] : vector<8x16xf32> to vector<8xf32>
    %30 = vector.shape_cast %29 : vector<8xf32> to vector<8x1xf32>
    %31 = tpu.reciprocal %30 {approx = true} : vector<8x1xf32> -> vector<8x1xf32>
    %32 = vector.broadcast %31 : vector<8x1xf32> to vector<8x16xf32>
    %33 = arith.mulf %28, %32 : vector<8x16xf32>
    %c0_20 = arith.constant 0 : index
    %c0_21 = arith.constant 0 : index
    %c0_22 = arith.constant 0 : index
    %c0_23 = arith.constant 0 : index
    %34 = vector.load %arg12[%c0_20, %c0_21, %c0_22, %c0_23] : memref<1x4x8x16xf32, #tpu.memory_space<vmem>>, vector<1x1x8x16xf32>
    %35 = vector.shape_cast %34 : vector<1x1x8x16xf32> to vector<8x16xf32>
    %36 = vector.shape_cast %33 : vector<8x16xf32> to vector<1x1x8x16xf32>
    tpu.vector_store %arg12[%c0_20, %c0_21, %c0_22, %c0_23], %36 {strides = array<i32>} : memref<1x4x8x16xf32, #tpu.memory_space<vmem>>, vector<1x1x8x16xf32>,
    %cst_24 = arith.constant dense<0.000000e+00> : vector<8x8xf32>
    %37 = tpu.matmul %33, %20, %cst_24 {dimension_numbers = #tpu.dot_dimension_numbers<[1], [0], [0], [1], [0, 0, 1, 1], [], []>} : vector<8x16xf32>, vector<16x8xf32>, vector<8x8xf32> -> vector<8x8xf32>
    %38 = vector.extract_strided_slice %11 {offsets = [0, 8], sizes = [8, 8], strides = [1, 1]} : vector<8x32xf32> to vector<8x8xf32>
    %39 = vector.extract_strided_slice %13 {offsets = [0, 8], sizes = [16, 8], strides = [1, 1]} : vector<16x32xf32> to vector<16x8xf32>
    %40 = vector.extract_strided_slice %15 {offsets = [0, 8], sizes = [16, 8], strides = [1, 1]} : vector<16x32xf32> to vector<16x8xf32>
    %cst_25 = arith.constant dense<0.000000e+00> : vector<8x16xf32>
    %41 = tpu.matmul %38, %39, %cst_25 {dimension_numbers = #tpu.dot_dimension_numbers<[1], [1], [0], [0], [0, 0, 1, 0], [], []>} : vector<8x8xf32>, vector<16x8xf32>, vector<8x16xf32> -> vector<8x16xf32>
    %42 = vector.broadcast %17 : vector<1x16xf32> to vector<8x16xf32>
    %43 = arith.addf %41, %42 : vector<8x16xf32>
    %cst_26 = arith.constant dense<0xFF800000> : vector<8xf32>
    %44 = vector.multi_reduction <maximumf>, %43, %cst_26 [1] : vector<8x16xf32> to vector<8xf32>
    %45 = vector.shape_cast %44 : vector<8xf32> to vector<8x1xf32>
    %46 = vector.broadcast %45 : vector<8x1xf32> to vector<8x16xf32>
    %47 = arith.subf %43, %46 : vector<8x16xf32>
    %48 = math.exp %47 : vector<8x16xf32>
    %cst_27 = arith.constant dense<0.000000e+00> : vector<8xf32>
    %49 = vector.multi_reduction <add>, %48, %cst_27 [1] : vector<8x16xf32> to vector<8xf32>
    %50 = vector.shape_cast %49 : vector<8xf32> to vector<8x1xf32>
    %51 = tpu.reciprocal %50 {approx = true} : vector<8x1xf32> -> vector<8x1xf32>
    %52 = vector.broadcast %51 : vector<8x1xf32> to vector<8x16xf32>
    %53 = arith.mulf %48, %52 : vector<8x16xf32>
    %c0_28 = arith.constant 0 : index
    %c1 = arith.constant 1 : index
    %c0_29 = arith.constant 0 : index
    %c0_30 = arith.constant 0 : index
    %54 = vector.load %arg12[%c0_28, %c1, %c0_29, %c0_30] : memref<1x4x8x16xf32, #tpu.memory_space<vmem>>, vector<1x1x8x16xf32>
    %55 = vector.shape_cast %54 : vector<1x1x8x16xf32> to vector<8x16xf32>
    %56 = vector.shape_cast %53 : vector<8x16xf32> to vector<1x1x8x16xf32>
    tpu.vector_store %arg12[%c0_28, %c1, %c0_29, %c0_30], %56 {strides = array<i32>} : memref<1x4x8x16xf32, #tpu.memory_space<vmem>>, vector<1x1x8x16xf32>,
    %cst_31 = arith.constant dense<0.000000e+00> : vector<8x8xf32>
    %57 = tpu.matmul %53, %40, %cst_31 {dimension_numbers = #tpu.dot_dimension_numbers<[1], [0], [0], [1], [0, 0, 1, 1], [], []>} : vector<8x16xf32>, vector<16x8xf32>, vector<8x8xf32> -> vector<8x8xf32>
    %58 = vector.extract_strided_slice %11 {offsets = [0, 16], sizes = [8, 8], strides = [1, 1]} : vector<8x32xf32> to vector<8x8xf32>
    %59 = vector.extract_strided_slice %13 {offsets = [0, 16], sizes = [16, 8], strides = [1, 1]} : vector<16x32xf32> to vector<16x8xf32>
    %60 = vector.extract_strided_slice %15 {offsets = [0, 16], sizes = [16, 8], strides = [1, 1]} : vector<16x32xf32> to vector<16x8xf32>
    %cst_32 = arith.constant dense<0.000000e+00> : vector<8x16xf32>
    %61 = tpu.matmul %58, %59, %cst_32 {dimension_numbers = #tpu.dot_dimension_numbers<[1], [1], [0], [0], [0, 0, 1, 0], [], []>} : vector<8x8xf32>, vector<16x8xf32>, vector<8x16xf32> -> vector<8x16xf32>
    %62 = vector.broadcast %17 : vector<1x16xf32> to vector<8x16xf32>
    %63 = arith.addf %61, %62 : vector<8x16xf32>
    %cst_33 = arith.constant dense<0xFF800000> : vector<8xf32>
    %64 = vector.multi_reduction <maximumf>, %63, %cst_33 [1] : vector<8x16xf32> to vector<8xf32>
    %65 = vector.shape_cast %64 : vector<8xf32> to vector<8x1xf32>
    %66 = vector.broadcast %65 : vector<8x1xf32> to vector<8x16xf32>
    %67 = arith.subf %63, %66 : vector<8x16xf32>
    %68 = math.exp %67 : vector<8x16xf32>
    %cst_34 = arith.constant dense<0.000000e+00> : vector<8xf32>
    %69 = vector.multi_reduction <add>, %68, %cst_34 [1] : vector<8x16xf32> to vector<8xf32>
    %70 = vector.shape_cast %69 : vector<8xf32> to vector<8x1xf32>
    %71 = tpu.reciprocal %70 {approx = true} : vector<8x1xf32> -> vector<8x1xf32>
    %72 = vector.broadcast %71 : vector<8x1xf32> to vector<8x16xf32>
    %73 = arith.mulf %68, %72 : vector<8x16xf32>
    %c0_35 = arith.constant 0 : index
    %c2 = arith.constant 2 : index
    %c0_36 = arith.constant 0 : index
    %c0_37 = arith.constant 0 : index
    %74 = vector.load %arg12[%c0_35, %c2, %c0_36, %c0_37] : memref<1x4x8x16xf32, #tpu.memory_space<vmem>>, vector<1x1x8x16xf32>
    %75 = vector.shape_cast %74 : vector<1x1x8x16xf32> to vector<8x16xf32>
    %76 = vector.shape_cast %73 : vector<8x16xf32> to vector<1x1x8x16xf32>
    tpu.vector_store %arg12[%c0_35, %c2, %c0_36, %c0_37], %76 {strides = array<i32>} : memref<1x4x8x16xf32, #tpu.memory_space<vmem>>, vector<1x1x8x16xf32>,
    %cst_38 = arith.constant dense<0.000000e+00> : vector<8x8xf32>
    %77 = tpu.matmul %73, %60, %cst_38 {dimension_numbers = #tpu.dot_dimension_numbers<[1], [0], [0], [1], [0, 0, 1, 1], [], []>} : vector<8x16xf32>, vector<16x8xf32>, vector<8x8xf32> -> vector<8x8xf32>
    %78 = vector.extract_strided_slice %11 {offsets = [0, 24], sizes = [8, 8], strides = [1, 1]} : vector<8x32xf32> to vector<8x8xf32>
    %79 = vector.extract_strided_slice %13 {offsets = [0, 24], sizes = [16, 8], strides = [1, 1]} : vector<16x32xf32> to vector<16x8xf32>
    %80 = vector.extract_strided_slice %15 {offsets = [0, 24], sizes = [16, 8], strides = [1, 1]} : vector<16x32xf32> to vector<16x8xf32>
    %cst_39 = arith.constant dense<0.000000e+00> : vector<8x16xf32>
    %81 = tpu.matmul %78, %79, %cst_39 {dimension_numbers = #tpu.dot_dimension_numbers<[1], [1], [0], [0], [0, 0, 1, 0], [], []>} : vector<8x8xf32>, vector<16x8xf32>, vector<8x16xf32> -> vector<8x16xf32>
    %82 = vector.broadcast %17 : vector<1x16xf32> to vector<8x16xf32>
    %83 = arith.addf %81, %82 : vector<8x16xf32>
    %cst_40 = arith.constant dense<0xFF800000> : vector<8xf32>
    %84 = vector.multi_reduction <maximumf>, %83, %cst_40 [1] : vector<8x16xf32> to vector<8xf32>
    %85 = vector.shape_cast %84 : vector<8xf32> to vector<8x1xf32>
    %86 = vector.broadcast %85 : vector<8x1xf32> to vector<8x16xf32>
    %87 = arith.subf %83, %86 : vector<8x16xf32>
    %88 = math.exp %87 : vector<8x16xf32>
    %cst_41 = arith.constant dense<0.000000e+00> : vector<8xf32>
    %89 = vector.multi_reduction <add>, %88, %cst_41 [1] : vector<8x16xf32> to vector<8xf32>
    %90 = vector.shape_cast %89 : vector<8xf32> to vector<8x1xf32>
    %91 = tpu.reciprocal %90 {approx = true} : vector<8x1xf32> -> vector<8x1xf32>
    %92 = vector.broadcast %91 : vector<8x1xf32> to vector<8x16xf32>
    %93 = arith.mulf %88, %92 : vector<8x16xf32>
    %c0_42 = arith.constant 0 : index
    %c3 = arith.constant 3 : index
    %c0_43 = arith.constant 0 : index
    %c0_44 = arith.constant 0 : index
    %94 = vector.load %arg12[%c0_42, %c3, %c0_43, %c0_44] : memref<1x4x8x16xf32, #tpu.memory_space<vmem>>, vector<1x1x8x16xf32>
    %95 = vector.shape_cast %94 : vector<1x1x8x16xf32> to vector<8x16xf32>
    %96 = vector.shape_cast %93 : vector<8x16xf32> to vector<1x1x8x16xf32>
    tpu.vector_store %arg12[%c0_42, %c3, %c0_43, %c0_44], %96 {strides = array<i32>} : memref<1x4x8x16xf32, #tpu.memory_space<vmem>>, vector<1x1x8x16xf32>,
    %cst_45 = arith.constant dense<0.000000e+00> : vector<8x8xf32>
    %97 = tpu.matmul %93, %80, %cst_45 {dimension_numbers = #tpu.dot_dimension_numbers<[1], [0], [0], [1], [0, 0, 1, 1], [], []>} : vector<8x16xf32>, vector<16x8xf32>, vector<8x8xf32> -> vector<8x8xf32>
    %98 = tpu.concatenate %37, %57, %77, %97 in 1 : vector<8x8xf32>, vector<8x8xf32>, vector<8x8xf32>, vector<8x8xf32> -> vector<8x32xf32>
    %c0_46 = arith.constant 0 : index
    %c0_47 = arith.constant 0 : index
    %c0_48 = arith.constant 0 : index
    %99 = vector.load %arg11[%c0_46, %c0_47, %c0_48] : memref<1x8x32xf32, #tpu.memory_space<vmem>>, vector<1x8x32xf32>
    %100 = vector.shape_cast %99 : vector<1x8x32xf32> to vector<8x32xf32>
    %101 = vector.shape_cast %98 : vector<8x32xf32> to vector<1x8x32xf32>
    tpu.vector_store %arg11[%c0_46, %c0_47, %c0_48], %101 {strides = array<i32>} : memref<1x8x32xf32, #tpu.memory_space<vmem>>, vector<1x8x32xf32>,
    return
  }
  func.func @transform_0(%arg0: i32, %arg1: i32) -> (i32, i32, i32) {
    %c0_i32 = arith.constant 0 : i32
    %c0_i32_0 = arith.constant 0 : i32
    return %arg0, %arg1, %c0_i32 : i32, i32, i32
  }
  func.func @transform_1(%arg0: i32, %arg1: i32) -> (i32, i32, i32) {
    %c0_i32 = arith.constant 0 : i32
    %c0_i32_0 = arith.constant 0 : i32
    %c0_i32_1 = arith.constant 0 : i32
    return %arg0, %c0_i32, %c0_i32_0 : i32, i32, i32
  }
  func.func @transform_2(%arg0: i32, %arg1: i32) -> (i32, i32) {
    %c0_i32 = arith.constant 0 : i32
    %c0_i32_0 = arith.constant 0 : i32
    %c0_i32_1 = arith.constant 0 : i32
    return %c0_i32, %c0_i32_0 : i32, i32
  }
  func.func @transform_3(%arg0: i32, %arg1: i32) -> (i32, i32) {
    %c0_i32 = arith.constant 0 : i32
    %c0_i32_0 = arith.constant 0 : i32
    %c0_i32_1 = arith.constant 0 : i32
    return %c0_i32, %c0_i32_0 : i32, i32
  }
  func.func @transform_4(%arg0: i32, %arg1: i32) -> (i32, i32) {
    %c0_i32 = arith.constant 0 : i32
    %c0_i32_0 = arith.constant 0 : i32
    %c0_i32_1 = arith.constant 0 : i32
    return %c0_i32, %c0_i32_0 : i32, i32
  }
  func.func @transform_5(%arg0: i32, %arg1: i32) -> (i32, i32) {
    %c0_i32 = arith.constant 0 : i32
    %c0_i32_0 = arith.constant 0 : i32
    %c0_i32_1 = arith.constant 0 : i32
    return %c0_i32, %c0_i32_0 : i32, i32
  }
  func.func @transform_6(%arg0: i32, %arg1: i32) -> (i32, i32) {
    %c0_i32 = arith.constant 0 : i32
    %c0_i32_0 = arith.constant 0 : i32
    %c0_i32_1 = arith.constant 0 : i32
    return %c0_i32, %c0_i32_0 : i32, i32
  }
  func.func @transform_7(%arg0: i32, %arg1: i32) -> (i32, i32) {
    %c0_i32 = arith.constant 0 : i32
    %c0_i32_0 = arith.constant 0 : i32
    %c0_i32_1 = arith.constant 0 : i32
    return %c0_i32, %c0_i32_0 : i32, i32
  }
  func.func @transform_8(%arg0: i32, %arg1: i32) -> (i32, i32, i32) {
    %c0_i32 = arith.constant 0 : i32
    %c0_i32_0 = arith.constant 0 : i32
    %c0_i32_1 = arith.constant 0 : i32
    return %arg0, %c0_i32, %c0_i32_0 : i32, i32, i32
  }
  func.func @transform_9(%arg0: i32, %arg1: i32) -> (i32, i32, i32) {
    %c0_i32 = arith.constant 0 : i32
    %c0_i32_0 = arith.constant 0 : i32
    return %arg0, %arg1, %c0_i32 : i32, i32, i32
  }
  func.func @transform_10(%arg0: i32, %arg1: i32) -> (i32, i32, i32, i32) {
    %c0_i32 = arith.constant 0 : i32
    %c0_i32_0 = arith.constant 0 : i32
    %c0_i32_1 = arith.constant 0 : i32
    return %arg0, %c0_i32, %arg1, %c0_i32_0 : i32, i32, i32, i32
  }
  func.func @transform_11(%arg0: i32, %arg1: i32) -> (i32, i32, i32) {
    %c0_i32 = arith.constant 0 : i32
    %c0_i32_0 = arith.constant 0 : i32
    %c0_i32_1 = arith.constant 0 : i32
    return %arg0, %c0_i32, %c0_i32_0 : i32, i32, i32
  }
  func.func @transform_12(%arg0: i32, %arg1: i32) -> (i32, i32, i32) {
    %c0_i32 = arith.constant 0 : i32
    %c0_i32_0 = arith.constant 0 : i32
    %c0_i32_1 = arith.constant 0 : i32
    return %arg0, %c0_i32, %c0_i32_0 : i32, i32, i32
  }
}

module attributes {stable_mosaic.version = 11 : i64} {
  func.func @_attention_kernel(%arg0: i32, %arg1: i32, %arg2: memref<1x8x32xf32, #tpu.memory_space<vmem>>, %arg3: memref<1x16x48xf32, #tpu.memory_space<vmem>>, %arg4: memref<32x32xf32, #tpu.memory_space<vmem>>, %arg5: memref<1x32xf32, #tpu.memory_space<vmem>>, %arg6: memref<48x32xf32, #tpu.memory_space<vmem>>, %arg7: memref<1x32xf32, #tpu.memory_space<vmem>>, %arg8: memref<48x32xf32, #tpu.memory_space<vmem>>, %arg9: memref<1x32xf32, #tpu.memory_space<vmem>>, %arg10: memref<1x1x16xf32, #tpu.memory_space<vmem>>, %arg11: memref<1x8x32xf32, #tpu.memory_space<vmem>>, %arg12: memref<1x4x8x16xf32, #tpu.memory_space<vmem>>, %arg13: memref<1x16x32xf32, #tpu.memory_space<vmem>>, %arg14: memref<1x16x32xf32, #tpu.memory_space<vmem>>) attributes {dimension_semantics = [#tpu.dimension_semantics<parallel>, #tpu.dimension_semantics<arbitrary>], iteration_bounds = array<i64: 2, 1>, scalar_prefetch = 0 : i64, scratch_operands = 0 : i64, tpu.core_type = #tpu.core_type<tc>, window_params = [{transform_indices = @transform_0, window_bounds = array<i64: 1, 8, 32>}, {transform_indices = @transform_1, window_bounds = array<i64: 1, 16, 48>}, {pipeline_mode = #tpu.pipeline_mode<synchronous>, transform_indices = @transform_2, window_bounds = array<i64: 32, 32>}, {pipeline_mode = #tpu.pipeline_mode<synchronous>, transform_indices = @transform_3, window_bounds = array<i64: 1, 32>}, {pipeline_mode = #tpu.pipeline_mode<synchronous>, transform_indices = @transform_4, window_bounds = array<i64: 48, 32>}, {pipeline_mode = #tpu.pipeline_mode<synchronous>, transform_indices = @transform_5, window_bounds = array<i64: 1, 32>}, {pipeline_mode = #tpu.pipeline_mode<synchronous>, transform_indices = @transform_6, window_bounds = array<i64: 48, 32>}, {pipeline_mode = #tpu.pipeline_mode<synchronous>, transform_indices = @transform_7, window_bounds = array<i64: 1, 32>}, {transform_indices = @transform_8, window_bounds = array<i64: 1, 1, 16>}, {transform_indices = @transform_9, window_bounds = array<i64: 1, 8, 32>}, {transform_indices = @transform_10, window_bounds = array<i64: 1, 4, 8, 16>}, {transform_indices = @transform_11, window_bounds = array<i64: 1, 16, 32>}, {transform_indices = @transform_12, window_bounds = array<i64: 1, 16, 32>}]} {
    %c0_i32 = arith.constant 0 : i32
    %0 = arith.cmpi eq, %arg1, %c0_i32 : i32
    %1 = arith.extui %0 : i1 to i32
    %c0_i32_0 = arith.constant 0 : i32
    %2 = arith.cmpi ne, %1, %c0_i32_0 : i32
    scf.if %2 {
      %c0_49 = arith.constant 0 : index
      %c0_50 = arith.constant 0 : index
      %c0_51 = arith.constant 0 : index
      %102 = vector.load %arg3[%c0_49, %c0_50, %c0_51] : memref<1x16x48xf32, #tpu.memory_space<vmem>>, vector<1x16x48xf32>
      %103 = vector.shape_cast %102 : vector<1x16x48xf32> to vector<16x48xf32>
      %c0_52 = arith.constant 0 : index
      %c0_53 = arith.constant 0 : index
      %104 = vector.load %arg6[%c0_52, %c0_53] : memref<48x32xf32, #tpu.memory_space<vmem>>, vector<48x32xf32>
      %cst_54 = arith.constant dense<0.000000e+00> : vector<16x32xf32>
      %105 = tpu.matmul %103, %104, %cst_54 {dimension_numbers = #tpu.dot_dimension_numbers<[1], [0], [0], [1], [0, 0, 1, 1], [], []>} : vector<16x48xf32>, vector<48x32xf32>, vector<16x32xf32> -> vector<16x32xf32>
      %c0_55 = arith.constant 0 : index
      %c0_56 = arith.constant 0 : index
      %106 = vector.load %arg7[%c0_55, %c0_56] : memref<1x32xf32, #tpu.memory_space<vmem>>, vector<1x32xf32>
      %107 = vector.broadcast %106 : vector<1x32xf32> to vector<16x32xf32>
      %108 = arith.addf %105, %107 : vector<16x32xf32>
      %c0_57 = arith.constant 0 : index
      %c0_58 = arith.constant 0 : index
      %c0_59 = arith.constant 0 : index
      %109 = vector.load %arg13[%c0_57, %c0_58, %c0_59] : memref<1x16x32xf32, #tpu.memory_space<vmem>>, vector<1x16x32xf32>
      %110 = vector.shape_cast %109 : vector<1x16x32xf32> to vector<16x32xf32>
      %111 = vector.shape_cast %108 : vector<16x32xf32> to vector<1x16x32xf32>
      tpu.vector_store %arg13[%c0_57, %c0_58, %c0_59], %111 {strides = array<i32>} : memref<1x16x32xf32, #tpu.memory_space<vmem>>, vector<1x16x32xf32>,
      %c0_60 = arith.constant 0 : index
      %c0_61 = arith.constant 0 : index
      %112 = vector.load %arg8[%c0_60, %c0_61] : memref<48x32xf32, #tpu.memory_space<vmem>>, vector<48x32xf32>
      %cst_62 = arith.constant dense<0.000000e+00> : vector<16x32xf32>
      %113 = tpu.matmul %103, %112, %cst_62 {dimension_numbers = #tpu.dot_dimension_numbers<[1], [0], [0], [1], [0, 0, 1, 1], [], []>} : vector<16x48xf32>, vector<48x32xf32>, vector<16x32xf32> -> vector<16x32xf32>
      %c0_63 = arith.constant 0 : index
      %c0_64 = arith.constant 0 : index
      %114 = vector.load %arg9[%c0_63, %c0_64] : memref<1x32xf32, #tpu.memory_space<vmem>>, vector<1x32xf32>
      %115 = vector.broadcast %114 : vector<1x32xf32> to vector<16x32xf32>
      %116 = arith.addf %113, %115 : vector<16x32xf32>
      %c0_65 = arith.constant 0 : index
      %c0_66 = arith.constant 0 : index
      %c0_67 = arith.constant 0 : index
      %117 = vector.load %arg14[%c0_65, %c0_66, %c0_67] : memref<1x16x32xf32, #tpu.memory_space<vmem>>, vector<1x16x32xf32>
      %118 = vector.shape_cast %117 : vector<1x16x32xf32> to vector<16x32xf32>
      %119 = vector.shape_cast %116 : vector<16x32xf32> to vector<1x16x32xf32>
      tpu.vector_store %arg14[%c0_65, %c0_66, %c0_67], %119 {strides = array<i32>} : memref<1x16x32xf32, #tpu.memory_space<vmem>>, vector<1x16x32xf32>,
    } else {
    }
    %c0 = arith.constant 0 : index
    %c0_1 = arith.constant 0 : index
    %c0_2 = arith.constant 0 : index
    %3 = vector.load %arg2[%c0, %c0_1, %c0_2] : memref<1x8x32xf32, #tpu.memory_space<vmem>>, vector<1x8x32xf32>
    %4 = vector.shape_cast %3 : vector<1x8x32xf32> to vector<8x32xf32>
    %c0_3 = arith.constant 0 : index
    %c0_4 = arith.constant 0 : index
    %5 = vector.load %arg4[%c0_3, %c0_4] : memref<32x32xf32, #tpu.memory_space<vmem>>, vector<32x32xf32>
    %cst = arith.constant dense<0.000000e+00> : vector<8x32xf32>
    %6 = tpu.matmul %4, %5, %cst {dimension_numbers = #tpu.dot_dimension_numbers<[1], [0], [0], [1], [0, 0, 1, 1], [], []>} : vector<8x32xf32>, vector<32x32xf32>, vector<8x32xf32> -> vector<8x32xf32>
    %c0_5 = arith.constant 0 : index
    %c0_6 = arith.constant 0 : index
    %7 = vector.load %arg5[%c0_5, %c0_6] : memref<1x32xf32, #tpu.memory_space<vmem>>, vector<1x32xf32>
    %8 = vector.broadcast %7 : vector<1x32xf32> to vector<8x32xf32>
    %9 = arith.addf %6, %8 : vector<8x32xf32>
    %cst_7 = arith.constant 0.353553385 : f32
    %10 = vector.broadcast %cst_7 : f32 to vector<8x32xf32>
    %11 = arith.mulf %9, %10 : vector<8x32xf32>
    %c0_8 = arith.constant 0 : index
    %c0_9 = arith.constant 0 : index
    %c0_10 = arith.constant 0 : index
    %12 = vector.load %arg13[%c0_8, %c0_9, %c0_10] : memref<1x16x32xf32, #tpu.memory_space<vmem>>, vector<1x16x32xf32>
    %13 = vector.shape_cast %12 : vector<1x16x32xf32> to vector<16x32xf32>
    %c0_11 = arith.constant 0 : index
    %c0_12 = arith.constant 0 : index
    %c0_13 = arith.constant 0 : index
    %14 = vector.load %arg14[%c0_11, %c0_12, %c0_13] : memref<1x16x32xf32, #tpu.memory_space<vmem>>, vector<1x16x32xf32>
    %15 = vector.shape_cast %14 : vector<1x16x32xf32> to vector<16x32xf32>
    %c0_14 = arith.constant 0 : index
    %c0_15 = arith.constant 0 : index
    %c0_16 = arith.constant 0 : index
    %16 = vector.load %arg10[%c0_14, %c0_15, %c0_16] : memref<1x1x16xf32, #tpu.memory_space<vmem>>, vector<1x1x16xf32>
    %17 = vector.shape_cast %16 : vector<1x1x16xf32> to vector<1x16xf32>
    %18 = vector.extract_strided_slice %11 {offsets = [0, 0], sizes = [8, 8], strides = [1, 1]} : vector<8x32xf32> to vector<8x8xf32>
    %19 = vector.extract_strided_slice %13 {offsets = [0, 0], sizes = [16, 8], strides = [1, 1]} : vector<16x32xf32> to vector<16x8xf32>
    %20 = vector.extract_strided_slice %15 {offsets = [0, 0], sizes = [16, 8], strides = [1, 1]} : vector<16x32xf32> to vector<16x8xf32>
    %cst_17 = arith.constant dense<0.000000e+00> : vector<8x16xf32>
    %21 = tpu.matmul %18, %19, %cst_17 {dimension_numbers = #tpu.dot_dimension_numbers<[1], [1], [0], [0], [0, 0, 1, 0], [], []>} : vector<8x8xf32>, vector<16x8xf32>, vector<8x16xf32> -> vector<8x16xf32>
    %22 = vector.broadcast %17 : vector<1x16xf32> to vector<8x16xf32>
    %23 = arith.addf %21, %22 : vector<8x16xf32>
    %cst_18 = arith.constant dense<0xFF800000> : vector<8xf32>
    %24 = vector.multi_reduction <maximumf>, %23, %cst_18 [1] : vector<8x16xf32> to vector<8xf32>
    %25 = vector.shape_cast %24 : vector<8xf32> to vector<8x1xf32>
    %26 = vector.broadcast %25 : vector<8x1xf32> to vector<8x16xf32>
    %27 = arith.subf %23, %26 : vector<8x16xf32>
    %28 = math.exp %27 : vector<8x16xf32>
    %cst_19 = arith.constant dense<0.000000e+00> : vector<8xf32>
    %29 = vector.multi_reduction <add>, %28, %cst_19 [1] : vector<8x16xf32> to vector<8xf32>
    %30 = vector.shape_cast %29 : vector<8xf32> to vector<8x1xf32>
    %31 = tpu.reciprocal %30 {approx = true} : vector<8x1xf32> -> vector<8x1xf32>
    %32 = vector.broadcast %31 : vector<8x1xf32> to vector<8x16xf32>
    %33 = arith.mulf %28, %32 : vector<8x16xf32>
    %c0_20 = arith.constant 0 : index
    %c0_21 = arith.constant 0 : index
    %c0_22 = arith.constant 0 : index
    %c0_23 = arith.constant 0 : index
    %34 = vector.load %arg12[%c0_20, %c0_21, %c0_22, %c0_23] : memref<1x4x8x16xf32, #tpu.memory_space<vmem>>, vector<1x1x8x16xf32>
    %35 = vector.shape_cast %34 : vector<1x1x8x16xf32> to vector<8x16xf32>
    %36 = vector.shape_cast %33 : vector<8x16xf32> to vector<1x1x8x16xf32>
    tpu.vector_store %arg12[%c0_20, %c0_21, %c0_22, %c0_23], %36 {strides = array<i32>} : memref<1x4x8x16xf32, #tpu.memory_space<vmem>>, vector<1x1x8x16xf32>,
    %cst_24 = arith.constant dense<0.000000e+00> : vector<8x8xf32>
    %37 = tpu.matmul %33, %20, %cst_24 {dimension_numbers = #tpu.dot_dimension_numbers<[1], [0], [0], [1], [0, 0, 1, 1], [], []>} : vector<8x16xf32>, vector<16x8xf32>, vector<8x8xf32> -> vector<8x8xf32>
    %38 = vector.extract_strided_slice %11 {offsets = [0, 8], sizes = [8, 8], strides = [1, 1]} : vector<8x32xf32> to vector<8x8xf32>
    %39 = vector.extract_strided_slice %13 {offsets = [0, 8], sizes = [16, 8], strides = [1, 1]} : vector<16x32xf32> to vector<16x8xf32>
    %40 = vector.extract_strided_slice %15 {offsets = [0, 8], sizes = [16, 8], strides = [1, 1]} : vector<16x32xf32> to vector<16x8xf32>
    %cst_25 = arith.constant dense<0.000000e+00> : vector<8x16xf32>
    %41 = tpu.matmul %38, %39, %cst_25 {dimension_numbers = #tpu.dot_dimension_numbers<[1], [1], [0], [0], [0, 0, 1, 0], [], []>} : vector<8x8xf32>, vector<16x8xf32>, vector<8x16xf32> -> vector<8x16xf32>
    %42 = vector.broadcast %17 : vector<1x16xf32> to vector<8x16xf32>
    %43 = arith.addf %41, %42 : vector<8x16xf32>
    %cst_26 = arith.constant dense<0xFF800000> : vector<8xf32>
    %44 = vector.multi_reduction <maximumf>, %43, %cst_26 [1] : vector<8x16xf32> to vector<8xf32>
    %45 = vector.shape_cast %44 : vector<8xf32> to vector<8x1xf32>
    %46 = vector.broadcast %45 : vector<8x1xf32> to vector<8x16xf32>
    %47 = arith.subf %43, %46 : vector<8x16xf32>
    %48 = math.exp %47 : vector<8x16xf32>
    %cst_27 = arith.constant dense<0.000000e+00> : vector<8xf32>
    %49 = vector.multi_reduction <add>, %48, %cst_27 [1] : vector<8x16xf32> to vector<8xf32>
    %50 = vector.shape_cast %49 : vector<8xf32> to vector<8x1xf32>
    %51 = tpu.reciprocal %50 {approx = true} : vector<8x1xf32> -> vector<8x1xf32>
    %52 = vector.broadcast %51 : vector<8x1xf32> to vector<8x16xf32>
    %53 = arith.mulf %48, %52 : vector<8x16xf32>
    %c0_28 = arith.constant 0 : index
    %c1 = arith.constant 1 : index
    %c0_29 = arith.constant 0 : index
    %c0_30 = arith.constant 0 : index
    %54 = vector.load %arg12[%c0_28, %c1, %c0_29, %c0_30] : memref<1x4x8x16xf32, #tpu.memory_space<vmem>>, vector<1x1x8x16xf32>
    %55 = vector.shape_cast %54 : vector<1x1x8x16xf32> to vector<8x16xf32>
    %56 = vector.shape_cast %53 : vector<8x16xf32> to vector<1x1x8x16xf32>
    tpu.vector_store %arg12[%c0_28, %c1, %c0_29, %c0_30], %56 {strides = array<i32>} : memref<1x4x8x16xf32, #tpu.memory_space<vmem>>, vector<1x1x8x16xf32>,
    %cst_31 = arith.constant dense<0.000000e+00> : vector<8x8xf32>
    %57 = tpu.matmul %53, %40, %cst_31 {dimension_numbers = #tpu.dot_dimension_numbers<[1], [0], [0], [1], [0, 0, 1, 1], [], []>} : vector<8x16xf32>, vector<16x8xf32>, vector<8x8xf32> -> vector<8x8xf32>
    %58 = vector.extract_strided_slice %11 {offsets = [0, 16], sizes = [8, 8], strides = [1, 1]} : vector<8x32xf32> to vector<8x8xf32>
    %59 = vector.extract_strided_slice %13 {offsets = [0, 16], sizes = [16, 8], strides = [1, 1]} : vector<16x32xf32> to vector<16x8xf32>
    %60 = vector.extract_strided_slice %15 {offsets = [0, 16], sizes = [16, 8], strides = [1, 1]} : vector<16x32xf32> to vector<16x8xf32>
    %cst_32 = arith.constant dense<0.000000e+00> : vector<8x16xf32>
    %61 = tpu.matmul %58, %59, %cst_32 {dimension_numbers = #tpu.dot_dimension_numbers<[1], [1], [0], [0], [0, 0, 1, 0], [], []>} : vector<8x8xf32>, vector<16x8xf32>, vector<8x16xf32> -> vector<8x16xf32>
    %62 = vector.broadcast %17 : vector<1x16xf32> to vector<8x16xf32>
    %63 = arith.addf %61, %62 : vector<8x16xf32>
    %cst_33 = arith.constant dense<0xFF800000> : vector<8xf32>
    %64 = vector.multi_reduction <maximumf>, %63, %cst_33 [1] : vector<8x16xf32> to vector<8xf32>
    %65 = vector.shape_cast %64 : vector<8xf32> to vector<8x1xf32>
    %66 = vector.broadcast %65 : vector<8x1xf32> to vector<8x16xf32>
    %67 = arith.subf %63, %66 : vector<8x16xf32>
    %68 = math.exp %67 : vector<8x16xf32>
    %cst_34 = arith.constant dense<0.000000e+00> : vector<8xf32>
    %69 = vector.multi_reduction <add>, %68, %cst_34 [1] : vector<8x16xf32> to vector<8xf32>
    %70 = vector.shape_cast %69 : vector<8xf32> to vector<8x1xf32>
    %71 = tpu.reciprocal %70 {approx = true} : vector<8x1xf32> -> vector<8x1xf32>
    %72 = vector.broadcast %71 : vector<8x1xf32> to vector<8x16xf32>
    %73 = arith.mulf %68, %72 : vector<8x16xf32>
    %c0_35 = arith.constant 0 : index
    %c2 = arith.constant 2 : index
    %c0_36 = arith.constant 0 : index
    %c0_37 = arith.constant 0 : index
    %74 = vector.load %arg12[%c0_35, %c2, %c0_36, %c0_37] : memref<1x4x8x16xf32, #tpu.memory_space<vmem>>, vector<1x1x8x16xf32>
    %75 = vector.shape_cast %74 : vector<1x1x8x16xf32> to vector<8x16xf32>
    %76 = vector.shape_cast %73 : vector<8x16xf32> to vector<1x1x8x16xf32>
    tpu.vector_store %arg12[%c0_35, %c2, %c0_36, %c0_37], %76 {strides = array<i32>} : memref<1x4x8x16xf32, #tpu.memory_space<vmem>>, vector<1x1x8x16xf32>,
    %cst_38 = arith.constant dense<0.000000e+00> : vector<8x8xf32>
    %77 = tpu.matmul %73, %60, %cst_38 {dimension_numbers = #tpu.dot_dimension_numbers<[1], [0], [0], [1], [0, 0, 1, 1], [], []>} : vector<8x16xf32>, vector<16x8xf32>, vector<8x8xf32> -> vector<8x8xf32>
    %78 = vector.extract_strided_slice %11 {offsets = [0, 24], sizes = [8, 8], strides = [1, 1]} : vector<8x32xf32> to vector<8x8xf32>
    %79 = vector.extract_strided_slice %13 {offsets = [0, 24], sizes = [16, 8], strides = [1, 1]} : vector<16x32xf32> to vector<16x8xf32>
    %80 = vector.extract_strided_slice %15 {offsets = [0, 24], sizes = [16, 8], strides = [1, 1]} : vector<16x32xf32> to vector<16x8xf32>
    %cst_39 = arith.constant dense<0.000000e+00> : vector<8x16xf32>
    %81 = tpu.matmul %78, %79, %cst_39 {dimension_numbers = #tpu.dot_dimension_numbers<[1], [1], [0], [0], [0, 0, 1, 0], [], []>} : vector<8x8xf32>, vector<16x8xf32>, vector<8x16xf32> -> vector<8x16xf32>
    %82 = vector.broadcast %17 : vector<1x16xf32> to vector<8x16xf32>
    %83 = arith.addf %81, %82 : vector<8x16xf32>
    %cst_40 = arith.constant dense<0xFF800000> : vector<8xf32>
    %84 = vector.multi_reduction <maximumf>, %83, %cst_40 [1] : vector<8x16xf32> to vector<8xf32>
    %85 = vector.shape_cast %84 : vector<8xf32> to vector<8x1xf32>
    %86 = vector.broadcast %85 : vector<8x1xf32> to vector<8x16xf32>
    %87 = arith.subf %83, %86 : vector<8x16xf32>
    %88 = math.exp %87 : vector<8x16xf32>
    %cst_41 = arith.constant dense<0.000000e+00> : vector<8xf32>
    %89 = vector.multi_reduction <add>, %88, %cst_41 [1] : vector<8x16xf32> to vector<8xf32>
    %90 = vector.shape_cast %89 : vector<8xf32> to vector<8x1xf32>
    %91 = tpu.reciprocal %90 {approx = true} : vector<8x1xf32> -> vector<8x1xf32>
    %92 = vector.broadcast %91 : vector<8x1xf32> to vector<8x16xf32>
    %93 = arith.mulf %88, %92 : vector<8x16xf32>
    %c0_42 = arith.constant 0 : index
    %c3 = arith.constant 3 : index
    %c0_43 = arith.constant 0 : index
    %c0_44 = arith.constant 0 : index
    %94 = vector.load %arg12[%c0_42, %c3, %c0_43, %c0_44] : memref<1x4x8x16xf32, #tpu.memory_space<vmem>>, vector<1x1x8x16xf32>
    %95 = vector.shape_cast %94 : vector<1x1x8x16xf32> to vector<8x16xf32>
    %96 = vector.shape_cast %93 : vector<8x16xf32> to vector<1x1x8x16xf32>
    tpu.vector_store %arg12[%c0_42, %c3, %c0_43, %c0_44], %96 {strides = array<i32>} : memref<1x4x8x16xf32, #tpu.memory_space<vmem>>, vector<1x1x8x16xf32>,
    %cst_45 = arith.constant dense<0.000000e+00> : vector<8x8xf32>
    %97 = tpu.matmul %93, %80, %cst_45 {dimension_numbers = #tpu.dot_dimension_numbers<[1], [0], [0], [1], [0, 0, 1, 1], [], []>} : vector<8x16xf32>, vector<16x8xf32>, vector<8x8xf32> -> vector<8x8xf32>
    %98 = tpu.concatenate %37, %57, %77, %97 in 1 : vector<8x8xf32>, vector<8x8xf32>, vector<8x8xf32>, vector<8x8xf32> -> vector<8x32xf32>
    %c0_46 = arith.constant 0 : index
    %c0_47 = arith.constant 0 : index
    %c0_48 = arith.constant 0 : index
    %99 = vector.load %arg11[%c0_46, %c0_47, %c0_48] : memref<1x8x32xf32, #tpu.memory_space<vmem>>, vector<1x8x32xf32>
    %100 = vector.shape_cast %99 : vector<1x8x32xf32> to vector<8x32xf32>
    %101 = vector.shape_cast %98 : vector<8x32xf32> to vector<1x8x32xf32>
    tpu.vector_store %arg11[%c0_46, %c0_47, %c0_48], %101 {strides = array<i32>} : memref<1x8x32xf32, #tpu.memory_space<vmem>>, vector<1x8x32xf32>,
    return
  }
  func.func @transform_0(%arg0: i32, %arg1: i32) -> (i32, i32, i32) {
    %c0_i32 = arith.constant 0 : i32
    %c0_i32_0 = arith.constant 0 : i32
    return %arg0, %arg1, %c0_i32 : i32, i32, i32
  }
  func.func @transform_1(%arg0: i32, %arg1: i32) -> (i32, i32, i32) {
    %c0_i32 = arith.constant 0 : i32
    %c0_i32_0 = arith.constant 0 : i32
    %c0_i32_1 = arith.constant 0 : i32
    return %arg0, %c0_i32, %c0_i32_0 : i32, i32, i32
  }
  func.func @transform_2(%arg0: i32, %arg1: i32) -> (i32, i32) {
    %c0_i32 = arith.constant 0 : i32
    %c0_i32_0 = arith.constant 0 : i32
    %c0_i32_1 = arith.constant 0 : i32
    return %c0_i32, %c0_i32_0 : i32, i32
  }
  func.func @transform_3(%arg0: i32, %arg1: i32) -> (i32, i32) {
    %c0_i32 = arith.constant 0 : i32
    %c0_i32_0 = arith.constant 0 : i32
    %c0_i32_1 = arith.constant 0 : i32
    return %c0_i32, %c0_i32_0 : i32, i32
  }
  func.func @transform_4(%arg0: i32, %arg1: i32) -> (i32, i32) {
    %c0_i32 = arith.constant 0 : i32
    %c0_i32_0 = arith.constant 0 : i32
    %c0_i32_1 = arith.constant 0 : i32
    return %c0_i32, %c0_i32_0 : i32, i32
  }
  func.func @transform_5(%arg0: i32, %arg1: i32) -> (i32, i32) {
    %c0_i32 = arith.constant 0 : i32
    %c0_i32_0 = arith.constant 0 : i32
    %c0_i32_1 = arith.constant 0 : i32
    return %c0_i32, %c0_i32_0 : i32, i32
  }
  func.func @transform_6(%arg0: i32, %arg1: i32) -> (i32, i32) {
    %c0_i32 = arith.constant 0 : i32
    %c0_i32_0 = arith.constant 0 : i32
    %c0_i32_1 = arith.constant 0 : i32
    return %c0_i32, %c0_i32_0 : i32, i32
  }
  func.func @transform_7(%arg0: i32, %arg1: i32) -> (i32, i32) {
    %c0_i32 = arith.constant 0 : i32
    %c0_i32_0 = arith.constant 0 : i32
    %c0_i32_1 = arith.constant 0 : i32
    return %c0_i32, %c0_i32_0 : i32, i32
  }
  func.func @transform_8(%arg0: i32, %arg1: i32) -> (i32, i32, i32) {
    %c0_i32 = arith.constant 0 : i32
    %c0_i32_0 = arith.constant 0 : i32
    %c0_i32_1 = arith.constant 0 : i32
    return %arg0, %c0_i32, %c0_i32_0 : i32, i32, i32
  }
  func.func @transform_9(%arg0: i32, %arg1: i32) -> (i32, i32, i32) {
    %c0_i32 = arith.constant 0 : i32
    %c0_i32_0 = arith.constant 0 : i32
    return %arg0, %arg1, %c0_i32 : i32, i32, i32
  }
  func.func @transform_10(%arg0: i32, %arg1: i32) -> (i32, i32, i32, i32) {
    %c0_i32 = arith.constant 0 : i32
    %c0_i32_0 = arith.constant 0 : i32
    %c0_i32_1 = arith.constant 0 : i32
    return %arg0, %c0_i32, %arg1, %c0_i32_0 : i32, i32, i32, i32
  }
  func.func @transform_11(%arg0: i32, %arg1: i32) -> (i32, i32, i32) {
    %c0_i32 = arith.constant 0 : i32
    %c0_i32_0 = arith.constant 0 : i32
    %c0_i32_1 = arith.constant 0 : i32
    return %arg0, %c0_i32, %c0_i32_0 : i32, i32, i32
  }
  func.func @transform_12(%arg0: i32, %arg1: i32) -> (i32, i32, i32) {
    %c0_i32 = arith.constant 0 : i32
    %c0_i32_0 = arith.constant 0 : i32
    %c0_i32_1 = arith.constant 0 : i32
    return %arg0, %c0_i32, %c0_i32_0 : i32, i32, i32
  }
}

</mosaic_0001>

<llo_original>
// kernel: tpu_custom_call.1
$region0: #{tpu_custom_call.1}
  #allocation0 [shape = 'u32[]', space=smem, size = 0x4, offset = 0x4, fixed_abs, tag = 'smem constant byte address 0x4 - core index']
  #allocation1 [shape = 'u32[72,128]{1,0:T(1,128)}', space=vmem, size = 0x9000, scoped, tag = 'internal scratch']
  %s0 = inlined_call_operand.vmem [shape: f32[2,8,32], index: 0, kind: input, shape index: {}]
  %s1 = inlined_call_operand.vmem [shape: f32[2,16,48], index: 1, kind: input, shape index: {}]
  %s2 = inlined_call_operand.vmem [shape: f32[32,32], index: 2, kind: input, shape index: {}]
  %s3 = inlined_call_operand.vmem [shape: f32[1,32], index: 3, kind: input, shape index: {}]
  %s4 = inlined_call_operand.vmem [shape: f32[48,32], index: 4, kind: input, shape index: {}]
  %s5 = inlined_call_operand.vmem [shape: f32[1,32], index: 5, kind: input, shape index: {}]
  %s6 = inlined_call_operand.vmem [shape: f32[48,32], index: 6, kind: input, shape index: {}]
  %s7 = inlined_call_operand.vmem [shape: f32[1,32], index: 7, kind: input, shape index: {}]
  %s8 = inlined_call_operand.vmem [shape: f32[2,1,16], index: 8, kind: input, shape index: {}]
  %s9 = inlined_call_operand.hbm [shape: f32[2,8,32], index: 9, kind: output, shape index: {0}]
  %s10 = inlined_call_operand.hbm [shape: f32[2,4,8,16], index: 10, kind: output, shape index: {1}]
  %s11 = inlined_call_operand.hbm [shape: f32[2,16,32], index: 11, kind: output, shape index: {2}]
  %s12 = inlined_call_operand.hbm [shape: f32[2,16,32], index: 12, kind: output, shape index: {3}]
  %13 = xla_tuple %s9, %s10, %s11, %s12
  %s14 = sld [smem:[#allocation0]]
  $region97: #{tpu_custom_call.1} parent=0
    _
  %s16 = ssub.s32 1, %s14
  %s17 = scalar_select 0, %s16, %s14
  $region1: #{tpu_custom_call.1} parent=0
    #allocation2 [shape = 'u8[8192]{0}', space=vmem, size = 0x2000, scoped, tag = 'output window, operand 0']
    #allocation3 [shape = 's32[2]{0}', space=sflag, size = 0x8, scoped, tag = 'scoped memory for tpu_custom_call.1']
    #allocation4 [shape = 'u8[32768]{0}', space=vmem, size = 0x8000, scoped, tag = 'output window, operand 1']
    #allocation5 [shape = 's32[2]{0}', space=sflag, size = 0x8, scoped, tag = 'scoped memory for tpu_custom_call.1']
    #allocation6 [shape = 'u8[16384]{0}', space=vmem, size = 0x4000, scoped, tag = 'output window, operand 2']
    #allocation7 [shape = 'u8[16384]{0}', space=vmem, size = 0x4000, scoped, tag = 'output window, operand 3']
    #allocation8 [shape = 's32[2]{0}', space=sflag, size = 0x8, scoped, tag = 'scoped memory for tpu_custom_call.1']
    %18 = vsyncpa [#allocation3], 0
    %s19 = scalar_lea.sflag [#allocation3], 1
    %20 = vsyncpa %s19, 0
    %21 = vsyncpa [#allocation5], 0
    %s22 = scalar_lea.sflag [#allocation5], 1
    %23 = vsyncpa %s22, 0
    %24 = vsyncpa [#allocation8], 0
    %s25 = scalar_lea.sflag [#allocation8], 1
    %26 = vsyncpa %s25, 0
    loop: start=0, step=1, limit=4
    $region2: #{tpu_custom_call.1} parent=1 // loop_pre_header
      _
    $region3: #{tpu_custom_call.1} parent=1 // loop_header
      %s28 = sphi 0, %s32
      %p29 = scmp.ge.s32.totalorder %s28, 4
      %s35 = sphi 0, %s47
      %s36 = sphi 0, %s43
      %s37 = sphi 0, %s35
      %s38 = sphi 0, %s36
      %s39 = sphi 0, %s37
      %s40 = sphi 0, %s38
      %s52 = sphi 0, %s54
      %s55 = sphi 0, %s52
      %s56 = sphi 0, %s55
      %s72 = sphi 0, %s56
      %s78 = sphi 0, %s80
      %s81 = sphi 0, %s78
      %s82 = sphi 0, %s81
      %s98 = sphi 0, %s82
      %s102 = sphi 0, %s102
      %s104 = sphi 0, %s102
      %s105 = sphi 0, %s104
      %s119 = sphi 0, %s105
      %s123 = sphi 0, %s123
      %s125 = sphi 0, %s123
      %s126 = sphi 0, %s125
      %s140 = sphi 0, %s126
      %s144 = sphi 0, %s144
      %s146 = sphi 0, %s144
      %s147 = sphi 0, %s146
      %s161 = sphi 0, %s147
      %s165 = sphi 0, %s165
      %s167 = sphi 0, %s165
      %s168 = sphi 0, %s167
      %s182 = sphi 0, %s168
      %s186 = sphi 0, %s186
      %s188 = sphi 0, %s186
      %s189 = sphi 0, %s188
      %s203 = sphi 0, %s189
      %s207 = sphi 0, %s207
      %s209 = sphi 0, %s207
      %s210 = sphi 0, %s209
      %s224 = sphi 0, %s210
      %s230 = sphi 0, %s232
      %s233 = sphi 0, %s230
      %s234 = sphi 0, %s233
      %s250 = sphi 0, %s234
      %s258 = sphi 0, %s260
      %s261 = sphi 0, %s258
      %s262 = sphi 0, %s261
      %s278 = sphi 0, %s262
      %s286 = sphi 0, %s288
      %s289 = sphi 0, %s286
      %s290 = sphi 0, %s289
      %s306 = sphi 0, %s290
      %s312 = sphi 0, %s314
      %s315 = sphi 0, %s312
      %s316 = sphi 0, %s315
      %s332 = sphi 0, %s316
      %s338 = sphi 0, %s340
      %s341 = sphi 0, %s338
      %s342 = sphi 0, %s341
      %s358 = sphi 0, %s342
    $region4: #{tpu_custom_call.1} parent=1 // loop_header_branch
      %31 = sbr.rel (%p29) target = $region8
    $region5: #{tpu_custom_call.1} parent=1 // loop_body
      %s33 = ssub.s32 %s28, 1
      %s34 = ssub.s32 %s28, 2
      %s41 = sadd.s32 1, %s36
      %p42 = scmp.ge.s32.totalorder %s41, 1
      %s43 = scalar_select %p42, 0, %s41
      %s44 = sadd.s32 1, %s35
      %s45 = scalar_select %p42, %s44, %s35
      %p46 = scmp.ge.s32.totalorder %s45, 2
      %s47 = scalar_select %p46, 0, %s45
      %s48 = ssub.s32 %s35, %s47
      %s49 = ssub.s32 %s36, %s43
      %s50 = sor.u32 %s48, %s49
      %p51 = scmp.eq.s32.totalorder %s50, 0
      %s53 = sadd.s32 %s52, 1
      %s54 = scalar_select %p51, %s52, %s53
      %p57 = pneg %p51
      %p58 = scmp.eq.s32.totalorder %s28, 1
      %p59 = por %p57, %p58
      %p60 = scmp.ne.s32.totalorder %s52, %s55
      %p61 = scmp.eq.s32.totalorder %s28, 0
      %p62 = por %p60, %p61
      %p63 = scmp.ne.s32.totalorder %s52, %s55
      %p64 = scmp.eq.s32.totalorder %s33, 1
      %p65 = por %p63, %p64
      %p66 = scmp.ne.s32.totalorder %s55, %s56
      %p67 = scmp.eq.s32.totalorder %s33, 0
      %p68 = por %p66, %p67
      %p69 = scmp.ne.s32.totalorder %s55, %s56
      %p70 = scmp.eq.s32.totalorder %s34, 1
      %p71 = por %p69, %p70
      %p73 = scmp.ne.s32.totalorder %s56, %s72
      %p74 = scmp.eq.s32.totalorder %s34, 0
      %p75 = por %p73, %p74
      %s76 = ssub.s32 %s35, %s47
      %p77 = scmp.eq.s32.totalorder %s76, 0
      %s79 = sadd.s32 %s78, 1
      %s80 = scalar_select %p77, %s78, %s79
      %p83 = pneg %p77
      %p84 = scmp.eq.s32.totalorder %s28, 1
      %p85 = por %p83, %p84
      %p86 = scmp.ne.s32.totalorder %s78, %s81
      %p87 = scmp.eq.s32.totalorder %s28, 0
      %p88 = por %p86, %p87
      %p89 = scmp.ne.s32.totalorder %s78, %s81
      %p90 = scmp.eq.s32.totalorder %s33, 1
      %p91 = por %p89, %p90
      %p92 = scmp.ne.s32.totalorder %s81, %s82
      %p93 = scmp.eq.s32.totalorder %s33, 0
      %p94 = por %p92, %p93
      %p95 = scmp.ne.s32.totalorder %s81, %s82
      %p96 = scmp.eq.s32.totalorder %s34, 1
      %p97 = por %p95, %p96
      %p99 = scmp.ne.s32.totalorder %s82, %s98
      %p100 = scmp.eq.s32.totalorder %s34, 0
      %p101 = por %p99, %p100
      %s103 = sadd.s32 %s102, 1
      %p106 = scmp.eq.s32.totalorder %s28, 1
      %p107 = scmp.ne.s32.totalorder %s102, %s104
      %p108 = scmp.eq.s32.totalorder %s28, 0
      %p109 = por %p107, %p108
      %p110 = scmp.ne.s32.totalorder %s102, %s104
      %p111 = scmp.eq.s32.totalorder %s33, 1
      %p112 = por %p110, %p111
      %p113 = scmp.ne.s32.totalorder %s104, %s105
      %p114 = scmp.eq.s32.totalorder %s33, 0
      %p115 = por %p113, %p114
      %p116 = scmp.ne.s32.totalorder %s104, %s105
      %p117 = scmp.eq.s32.totalorder %s34, 1
      %p118 = por %p116, %p117
      %p120 = scmp.ne.s32.totalorder %s105, %s119
      %p121 = scmp.eq.s32.totalorder %s34, 0
      %p122 = por %p120, %p121
      %s124 = sadd.s32 %s123, 1
      %p127 = scmp.eq.s32.totalorder %s28, 1
      %p128 = scmp.ne.s32.totalorder %s123, %s125
      %p129 = scmp.eq.s32.totalorder %s28, 0
      %p130 = por %p128, %p129
      %p131 = scmp.ne.s32.totalorder %s123, %s125
      %p132 = scmp.eq.s32.totalorder %s33, 1
      %p133 = por %p131, %p132
      %p134 = scmp.ne.s32.totalorder %s125, %s126
      %p135 = scmp.eq.s32.totalorder %s33, 0
      %p136 = por %p134, %p135
      %p137 = scmp.ne.s32.totalorder %s125, %s126
      %p138 = scmp.eq.s32.totalorder %s34, 1
      %p139 = por %p137, %p138
      %p141 = scmp.ne.s32.totalorder %s126, %s140
      %p142 = scmp.eq.s32.totalorder %s34, 0
      %p143 = por %p141, %p142
      %s145 = sadd.s32 %s144, 1
      %p148 = scmp.eq.s32.totalorder %s28, 1
      %p149 = scmp.ne.s32.totalorder %s144, %s146
      %p150 = scmp.eq.s32.totalorder %s28, 0
      %p151 = por %p149, %p150
      %p152 = scmp.ne.s32.totalorder %s144, %s146
      %p153 = scmp.eq.s32.totalorder %s33, 1
      %p154 = por %p152, %p153
      %p155 = scmp.ne.s32.totalorder %s146, %s147
      %p156 = scmp.eq.s32.totalorder %s33, 0
      %p157 = por %p155, %p156
      %p158 = scmp.ne.s32.totalorder %s146, %s147
      %p159 = scmp.eq.s32.totalorder %s34, 1
      %p160 = por %p158, %p159
      %p162 = scmp.ne.s32.totalorder %s147, %s161
      %p163 = scmp.eq.s32.totalorder %s34, 0
      %p164 = por %p162, %p163
      %s166 = sadd.s32 %s165, 1
      %p169 = scmp.eq.s32.totalorder %s28, 1
      %p170 = scmp.ne.s32.totalorder %s165, %s167
      %p171 = scmp.eq.s32.totalorder %s28, 0
      %p172 = por %p170, %p171
      %p173 = scmp.ne.s32.totalorder %s165, %s167
      %p174 = scmp.eq.s32.totalorder %s33, 1
      %p175 = por %p173, %p174
      %p176 = scmp.ne.s32.totalorder %s167, %s168
      %p177 = scmp.eq.s32.totalorder %s33, 0
      %p178 = por %p176, %p177
      %p179 = scmp.ne.s32.totalorder %s167, %s168
      %p180 = scmp.eq.s32.totalorder %s34, 1
      %p181 = por %p179, %p180
      %p183 = scmp.ne.s32.totalorder %s168, %s182
      %p184 = scmp.eq.s32.totalorder %s34, 0
      %p185 = por %p183, %p184
      %s187 = sadd.s32 %s186, 1
      %p190 = scmp.eq.s32.totalorder %s28, 1
      %p191 = scmp.ne.s32.totalorder %s186, %s188
      %p192 = scmp.eq.s32.totalorder %s28, 0
      %p193 = por %p191, %p192
      %p194 = scmp.ne.s32.totalorder %s186, %s188
      %p195 = scmp.eq.s32.totalorder %s33, 1
      %p196 = por %p194, %p195
      %p197 = scmp.ne.s32.totalorder %s188, %s189
      %p198 = scmp.eq.s32.totalorder %s33, 0
      %p199 = por %p197, %p198
      %p200 = scmp.ne.s32.totalorder %s188, %s189
      %p201 = scmp.eq.s32.totalorder %s34, 1
      %p202 = por %p200, %p201
      %p204 = scmp.ne.s32.totalorder %s189, %s203
      %p205 = scmp.eq.s32.totalorder %s34, 0
      %p206 = por %p204, %p205
      %s208 = sadd.s32 %s207, 1
      %p211 = scmp.eq.s32.totalorder %s28, 1
      %p212 = scmp.ne.s32.totalorder %s207, %s209
      %p213 = scmp.eq.s32.totalorder %s28, 0
      %p214 = por %p212, %p213
      %p215 = scmp.ne.s32.totalorder %s207, %s209
      %p216 = scmp.eq.s32.totalorder %s33, 1
      %p217 = por %p215, %p216
      %p218 = scmp.ne.s32.totalorder %s209, %s210
      %p219 = scmp.eq.s32.totalorder %s33, 0
      %p220 = por %p218, %p219
      %p221 = scmp.ne.s32.totalorder %s209, %s210
      %p222 = scmp.eq.s32.totalorder %s34, 1
      %p223 = por %p221, %p222
      %p225 = scmp.ne.s32.totalorder %s210, %s224
      %p226 = scmp.eq.s32.totalorder %s34, 0
      %p227 = por %p225, %p226
      %s228 = ssub.s32 %s35, %s47
      %p229 = scmp.eq.s32.totalorder %s228, 0
      %s231 = sadd.s32 %s230, 1
      %s232 = scalar_select %p229, %s230, %s231
      %p235 = pneg %p229
      %p236 = scmp.eq.s32.totalorder %s28, 1
      %p237 = por %p235, %p236
      %p238 = scmp.ne.s32.totalorder %s230, %s233
      %p239 = scmp.eq.s32.totalorder %s28, 0
      %p240 = por %p238, %p239
      %p241 = scmp.ne.s32.totalorder %s230, %s233
      %p242 = scmp.eq.s32.totalorder %s33, 1
      %p243 = por %p241, %p242
      %p244 = scmp.ne.s32.totalorder %s233, %s234
      %p245 = scmp.eq.s32.totalorder %s33, 0
      %p246 = por %p244, %p245
      %p247 = scmp.ne.s32.totalorder %s233, %s234
      %p248 = scmp.eq.s32.totalorder %s34, 1
      %p249 = por %p247, %p248
      %p251 = scmp.ne.s32.totalorder %s234, %s250
      %p252 = scmp.eq.s32.totalorder %s34, 0
      %p253 = por %p251, %p252
      %s254 = ssub.s32 %s35, %s47
      %s255 = ssub.s32 %s36, %s43
      %s256 = sor.u32 %s254, %s255
      %p257 = scmp.eq.s32.totalorder %s256, 0
      %s259 = sadd.s32 %s258, 1
      %s260 = scalar_select %p257, %s258, %s259
      %p263 = pneg %p257
      %p264 = scmp.eq.s32.totalorder %s28, 1
      %p265 = por %p263, %p264
      %p266 = scmp.ne.s32.totalorder %s258, %s261
      %p267 = scmp.eq.s32.totalorder %s28, 0
      %p268 = por %p266, %p267
      %p269 = scmp.ne.s32.totalorder %s258, %s261
      %p270 = scmp.eq.s32.totalorder %s33, 1
      %p271 = por %p269, %p270
      %p272 = scmp.ne.s32.totalorder %s261, %s262
      %p273 = scmp.eq.s32.totalorder %s33, 0
      %p274 = por %p272, %p273
      %p275 = scmp.ne.s32.totalorder %s261, %s262
      %p276 = scmp.eq.s32.totalorder %s34, 1
      %p277 = por %p275, %p276
      %p279 = scmp.ne.s32.totalorder %s262, %s278
      %p280 = scmp.eq.s32.totalorder %s34, 0
      %p281 = por %p279, %p280
      %s282 = ssub.s32 %s35, %s47
      %s283 = ssub.s32 %s36, %s43
      %s284 = sor.u32 %s282, %s283
      %p285 = scmp.eq.s32.totalorder %s284, 0
      %s287 = sadd.s32 %s286, 1
      %s288 = scalar_select %p285, %s286, %s287
      %p291 = pneg %p285
      %p292 = scmp.eq.s32.totalorder %s28, 1
      %p293 = por %p291, %p292
      %p294 = scmp.ne.s32.totalorder %s286, %s289
      %p295 = scmp.eq.s32.totalorder %s28, 0
      %p296 = por %p294, %p295
      %p297 = scmp.ne.s32.totalorder %s286, %s289
      %p298 = scmp.eq.s32.totalorder %s33, 1
      %p299 = por %p297, %p298
      %p300 = scmp.ne.s32.totalorder %s289, %s290
      %p301 = scmp.eq.s32.totalorder %s33, 0
      %p302 = por %p300, %p301
      %p303 = scmp.ne.s32.totalorder %s289, %s290
      %p304 = scmp.eq.s32.totalorder %s34, 1
      %p305 = por %p303, %p304
      %p307 = scmp.ne.s32.totalorder %s290, %s306
      %p308 = scmp.eq.s32.totalorder %s34, 0
      %p309 = por %p307, %p308
      %s310 = ssub.s32 %s35, %s47
      %p311 = scmp.eq.s32.totalorder %s310, 0
      %s313 = sadd.s32 %s312, 1
      %s314 = scalar_select %p311, %s312, %s313
      %p317 = pneg %p311
      %p318 = scmp.eq.s32.totalorder %s28, 1
      %p319 = por %p317, %p318
      %p320 = scmp.ne.s32.totalorder %s312, %s315
      %p321 = scmp.eq.s32.totalorder %s28, 0
      %p322 = por %p320, %p321
      %p323 = scmp.ne.s32.totalorder %s312, %s315
      %p324 = scmp.eq.s32.totalorder %s33, 1
      %p325 = por %p323, %p324
      %p326 = scmp.ne.s32.totalorder %s315, %s316
      %p327 = scmp.eq.s32.totalorder %s33, 0
      %p328 = por %p326, %p327
      %p329 = scmp.ne.s32.totalorder %s315, %s316
      %p330 = scmp.eq.s32.totalorder %s34, 1
      %p331 = por %p329, %p330
      %p333 = scmp.ne.s32.totalorder %s316, %s332
      %p334 = scmp.eq.s32.totalorder %s34, 0
      %p335 = por %p333, %p334
      %s336 = ssub.s32 %s35, %s47
      %p337 = scmp.eq.s32.totalorder %s336, 0
      %s339 = sadd.s32 %s338, 1
      %s340 = scalar_select %p337, %s338, %s339
      %p343 = pneg %p337
      %p344 = scmp.eq.s32.totalorder %s28, 1
      %p345 = por %p343, %p344
      %p346 = scmp.ne.s32.totalorder %s338, %s341
      %p347 = scmp.eq.s32.totalorder %s28, 0
      %p348 = por %p346, %p347
      %p349 = scmp.ne.s32.totalorder %s338, %s341
      %p350 = scmp.eq.s32.totalorder %s33, 1
      %p351 = por %p349, %p350
      %p352 = scmp.ne.s32.totalorder %s341, %s342
      %p353 = scmp.eq.s32.totalorder %s33, 0
      %p354 = por %p352, %p353
      %p355 = scmp.ne.s32.totalorder %s341, %s342
      %p356 = scmp.eq.s32.totalorder %s34, 1
      %p357 = por %p355, %p356
      %p359 = scmp.ne.s32.totalorder %s342, %s358
      %p360 = scmp.eq.s32.totalorder %s34, 0
      %p361 = por %p359, %p360
      %p362 = scmp.le.s32.totalorder 1, %s28
      %p363 = scmp.lt.s32.totalorder %s28, 3
      %p364 = pnand %p362, %p363
      %p365 = pneg %p364
      // Predicated region
      $region9: #{tpu_custom_call.1} parent=5 // pred_check
        _
      $region10: #{tpu_custom_call.1} parent=5 // pred_check_branch
        %367 = sbr.rel (%p364) target = $region12
      $region11: #{tpu_custom_call.1} parent=5 // pred_region
        %s368 = ssub.s32 %s28, 1
        // Predicated region
        $region13: #{tpu_custom_call.1} parent=11 // pred_check
          %p369 = pneg %p115
        $region14: #{tpu_custom_call.1} parent=11 // pred_check_branch
          %371 = sbr.rel (%p369) target = $region16
        $region15: #{tpu_custom_call.1} parent=11 // pred_region
          _
        $region16: #{tpu_custom_call.1} parent=11 // pred_fallthru
          _
        // Predicated region
        $region17: #{tpu_custom_call.1} parent=11 // pred_check
          %p372 = pneg %p136
        $region18: #{tpu_custom_call.1} parent=11 // pred_check_branch
          %374 = sbr.rel (%p372) target = $region20
        $region19: #{tpu_custom_call.1} parent=11 // pred_region
          _
        $region20: #{tpu_custom_call.1} parent=11 // pred_fallthru
          _
        // Predicated region
        $region21: #{tpu_custom_call.1} parent=11 // pred_check
          %p375 = pneg %p157
        $region22: #{tpu_custom_call.1} parent=11 // pred_check_branch
          %377 = sbr.rel (%p375) target = $region24
        $region23: #{tpu_custom_call.1} parent=11 // pred_region
          _
        $region24: #{tpu_custom_call.1} parent=11 // pred_fallthru
          _
        // Predicated region
        $region25: #{tpu_custom_call.1} parent=11 // pred_check
          %p378 = pneg %p178
        $region26: #{tpu_custom_call.1} parent=11 // pred_check_branch
          %380 = sbr.rel (%p378) target = $region28
        $region27: #{tpu_custom_call.1} parent=11 // pred_region
          _
        $region28: #{tpu_custom_call.1} parent=11 // pred_fallthru
          _
        // Predicated region
        $region29: #{tpu_custom_call.1} parent=11 // pred_check
          %p381 = pneg %p199
        $region30: #{tpu_custom_call.1} parent=11 // pred_check_branch
          %383 = sbr.rel (%p381) target = $region32
        $region31: #{tpu_custom_call.1} parent=11 // pred_region
          _
        $region32: #{tpu_custom_call.1} parent=11 // pred_fallthru
          _
        // Predicated region
        $region33: #{tpu_custom_call.1} parent=11 // pred_check
          %p384 = pneg %p220
        $region34: #{tpu_custom_call.1} parent=11 // pred_check_branch
          %386 = sbr.rel (%p384) target = $region36
        $region35: #{tpu_custom_call.1} parent=11 // pred_region
          _
        $region36: #{tpu_custom_call.1} parent=11 // pred_fallthru
          _
      $region12: #{tpu_custom_call.1} parent=5 // pred_fallthru
        _
      %p387 = scmp.lt.s32.totalorder %s28, 2
      // Predicated region
      $region37: #{tpu_custom_call.1} parent=5 // pred_check
        %p388 = pneg %p387
      $region38: #{tpu_custom_call.1} parent=5 // pred_check_branch
        %390 = sbr.rel (%p388) target = $region40
      $region39: #{tpu_custom_call.1} parent=5 // pred_region
        // Predicated region
        $region41: #{tpu_custom_call.1} parent=39 // pred_check
          %p391 = pneg %p62
        $region42: #{tpu_custom_call.1} parent=39 // pred_check_branch
          %393 = sbr.rel (%p391) target = $region44
        $region43: #{tpu_custom_call.1} parent=39 // pred_region
          %p394 = scmp.lt.s32.totalorder %s35, 1
          %s395 = scalar_select %p394, %s35, 1
          %p396 = scmp.lt.s32.totalorder %s36, 0
          %s397 = scalar_select %p396, %s36, 0
          %s398 = sadd.s32 %s397, %s395
          %s399 = smul.addr %s398, 8
          %s400 = scalar_lea.vmem %s0, %s399
        $region44: #{tpu_custom_call.1} parent=39 // pred_fallthru
          _
        // Predicated region
        $region45: #{tpu_custom_call.1} parent=39 // pred_check
          %p401 = pneg %p88
        $region46: #{tpu_custom_call.1} parent=39 // pred_check_branch
          %403 = sbr.rel (%p401) target = $region48
        $region47: #{tpu_custom_call.1} parent=39 // pred_region
          %p404 = scmp.lt.s32.totalorder %s35, 1
          %s405 = scalar_select %p404, %s35, 1
          %s406 = smul.addr %s405, 2
          %s407 = smul.addr %s406, 8
          %s408 = scalar_lea.vmem %s1, %s407
        $region48: #{tpu_custom_call.1} parent=39 // pred_fallthru
          _
        // Predicated region
        $region49: #{tpu_custom_call.1} parent=39 // pred_check
          %p409 = pneg %p240
        $region50: #{tpu_custom_call.1} parent=39 // pred_check_branch
          %411 = sbr.rel (%p409) target = $region52
        $region51: #{tpu_custom_call.1} parent=39 // pred_region
          %p412 = scmp.lt.s32.totalorder %s35, 1
          %s413 = scalar_select %p412, %s35, 1
          %s414 = scalar_lea.vmem %s8, %s413
        $region52: #{tpu_custom_call.1} parent=39 // pred_fallthru
          _
      $region40: #{tpu_custom_call.1} parent=5 // pred_fallthru
        _
      %p415 = scmp.le.s32.totalorder 1, %s28
      %p416 = scmp.lt.s32.totalorder %s28, 3
      %p417 = pnand %p415, %p416
      %p418 = pneg %p417
      // Predicated region
      $region53: #{tpu_custom_call.1} parent=5 // pred_check
        _
      $region54: #{tpu_custom_call.1} parent=5 // pred_check_branch
        %420 = sbr.rel (%p417) target = $region56
      $region55: #{tpu_custom_call.1} parent=5 // pred_region
        %s421 = ssub.s32 %s28, 1
        %p422 = scmp.lt.s32.totalorder %s37, 1
        %s423 = scalar_select %p422, %s37, 1
        %p424 = scmp.lt.s32.totalorder %s38, 0
        %s425 = scalar_select %p424, %s38, 0
        %s426 = sadd.s32 %s425, %s423
        %s427 = smul.addr %s426, 8
        %s428 = scalar_lea.vmem %s0, %s427
        %p429 = pneg %p68
        %p430 = pneg %p65
        %p431 = scmp.lt.s32.totalorder %s37, 1
        %s432 = scalar_select %p431, %s37, 1
        %s433 = smul.addr %s432, 2
        %s434 = smul.addr %s433, 8
        %s435 = scalar_lea.vmem %s1, %s434
        %p436 = pneg %p94
        %p437 = pneg %p91
        %p438 = pneg %p115
        %p439 = pneg %p112
        %p440 = pneg %p136
        %p441 = pneg %p133
        %p442 = pneg %p157
        %p443 = pneg %p154
        %p444 = pneg %p178
        %p445 = pneg %p175
        %p446 = pneg %p199
        %p447 = pneg %p196
        %p448 = pneg %p220
        %p449 = pneg %p217
        %p450 = scmp.lt.s32.totalorder %s37, 1
        %s451 = scalar_select %p450, %s37, 1
        %s452 = scalar_lea.vmem %s8, %s451
        %p453 = pneg %p246
        %p454 = pneg %p243
        %p455 = pneg %p274
        %p456 = pneg %p271
        %s457 = sand.u32 %s261, 1
        %s458 = scalar_lea.sflag [#allocation3], %s457
        %s459 = sand.u32 %s261, 1
        %s460 = smul.addr %s459, 8
        %s461 = scalar_lea.vmem [#allocation2], %s460
        %p462 = pneg %p302
        %p463 = pneg %p299
        %s464 = sand.u32 %s33, 1
        %s465 = scalar_lea.sflag [#allocation5], %s464
        %s466 = sand.u32 %s289, 1
        %s467 = smul.addr %s466, 32
        %s468 = scalar_lea.vmem [#allocation4], %s467
        %p469 = pneg %p328
        %p470 = pneg %p325
        %s471 = sand.u32 %s33, 1
        %s472 = scalar_lea.sflag [#allocation5], %s471
        %s473 = sand.u32 %s315, 1
        %s474 = smul.addr %s473, 16
        %s475 = scalar_lea.vmem [#allocation6], %s474
        %p476 = pneg %p354
        %p477 = pneg %p351
        %s478 = sand.u32 %s341, 1
        %s479 = scalar_lea.sflag [#allocation8], %s478
        %s480 = sand.u32 %s341, 1
        %s481 = smul.addr %s480, 16
        %s482 = scalar_lea.vmem [#allocation7], %s481
        %p483 = scmp.lt.s32.totalorder %s37, 1
        %s484 = scalar_select %p483, %s37, 1
        %p485 = scmp.lt.s32.totalorder %s38, 0
        %s486 = scalar_select %p485, %s38, 0
        %s487 = sadd.s32 %s486, %s484
        %s488 = smul.addr %s487, 8
        %s489 = scalar_lea.vmem %s0, %s488
        %p490 = scmp.lt.s32.totalorder %s37, 1
        %s491 = scalar_select %p490, %s37, 1
        %s492 = smul.addr %s491, 2
        %s493 = smul.addr %s492, 8
        %s494 = scalar_lea.vmem %s1, %s493
        %p495 = scmp.lt.s32.totalorder %s37, 1
        %s496 = scalar_select %p495, %s37, 1
        %s497 = scalar_lea.vmem %s8, %s496
        %p498 = scmp.eq.s32.totalorder %s38, 0
        // Predicated region
        $region57: #{tpu_custom_call.1} parent=55 // pred_check
          %p499 = pneg %p498
        $region58: #{tpu_custom_call.1} parent=55 // pred_check_branch
          %501 = sbr.rel (%p499) target = $region60
        $region59: #{tpu_custom_call.1} parent=55 // pred_region
          %v502 = vld [vmem:[%s494] sm:$0xff]
          %v503 = vld [vmem:[%s494 + $0x8] sm:$0xff]
          %v504 = vld [vmem:[%s4] sm:$0xff]
          %v505 = vld [vmem:[%s4 + $0x8] sm:$0xff]
          %v506 = vld [vmem:[%s4 + $0x10] sm:$0xff]
          %v507 = vld [vmem:[%s4 + $0x18] sm:$0xff]
          %v508 = vld [vmem:[%s4 + $0x20] sm:$0xff]
          %v509 = vld [vmem:[%s4 + $0x28] sm:$0xff]
          %v510 = vld [vmem:[%s5] sm:$0x1]
          %v512 = vperm.slane %v510, 0
          %vm514 = vcmask 392192
          %v516 = vsel %vm514, %v502, 0
          %v519 = vsel %vm514, %v503, 0
          %521 = vmatpush.msra.mxu0 0.0
          %522 = vmatpush.msra.mxu0 0.0
          %523 = vmatpush.msra.mxu0 0.0
          %524 = vmatpush.msra.mxu0 0.0
          %525 = vmatpush.msra.mxu0 0.0
          %526 = vmatpush.msra.mxu0 0.0
          %527 = vmatpush.msra.mxu0 0.0
          %528 = vmatpush.msra.mxu0 0.0
          %529 = vmatpush.msra.mxu0 0.0
          %530 = vmatpush.msra.mxu0 0.0
          %531 = vmatpush.msra.mxu0 %v509
          %532 = vmatpush.msra.mxu0 %v508
          %533 = vmatpush.msra.mxu0 %v507
          %534 = vmatpush.msra.mxu0 %v506
          %535 = vmatpush.msra.mxu0 %v505
          %536 = vmatpush.msra.mxu0 %v504
          %537 = vmatmul.f32.gmra.mxu0 %v516
          %v538 = vpop.f32.mrf.mxu0
          %v539 = vadd.f32 %v512, %v538
          %540 = vmatmul.f32.gmra.mxu0 %v519
          %v541 = vpop.f32.mrf.mxu0
          %v542 = vadd.f32 %v512, %v541
          %543 = vdwg.mxu0
          %vm544 = vcmask 261120
          %545 = vst.msk [vmem:[%s475] sm:$0xff] %vm544, %v539
          %546 = vst.msk [vmem:[%s475 + $0x8] sm:$0xff] %vm544, %v542
          %v547 = vld [vmem:[%s6] sm:$0xff]
          %v548 = vld [vmem:[%s6 + $0x8] sm:$0xff]
          %v549 = vld [vmem:[%s6 + $0x10] sm:$0xff]
          %v550 = vld [vmem:[%s6 + $0x18] sm:$0xff]
          %v551 = vld [vmem:[%s6 + $0x20] sm:$0xff]
          %v552 = vld [vmem:[%s6 + $0x28] sm:$0xff]
          %v553 = vld [vmem:[%s7] sm:$0x1]
          %v555 = vperm.slane %v553, 0
          %557 = vmatpush.msra.mxu0 0.0
          %558 = vmatpush.msra.mxu0 0.0
          %559 = vmatpush.msra.mxu0 0.0
          %560 = vmatpush.msra.mxu0 0.0
          %561 = vmatpush.msra.mxu0 0.0
          %562 = vmatpush.msra.mxu0 0.0
          %563 = vmatpush.msra.mxu0 0.0
          %564 = vmatpush.msra.mxu0 0.0
          %565 = vmatpush.msra.mxu0 0.0
          %566 = vmatpush.msra.mxu0 0.0
          %567 = vmatpush.msra.mxu0 %v552
          %568 = vmatpush.msra.mxu0 %v551
          %569 = vmatpush.msra.mxu0 %v550
          %570 = vmatpush.msra.mxu0 %v549
          %571 = vmatpush.msra.mxu0 %v548
          %572 = vmatpush.msra.mxu0 %v547
          %573 = vmatmul.f32.gmra.mxu0 %v516
          %v574 = vpop.f32.mrf.mxu0
          %v575 = vadd.f32 %v555, %v574
          %576 = vmatmul.f32.gmra.mxu0 %v519
          %v577 = vpop.f32.mrf.mxu0
          %v578 = vadd.f32 %v555, %v577
          %579 = vdwg.mxu0
          %580 = vst.msk [vmem:[%s482] sm:$0xff] %vm544, %v575
          %581 = vst.msk [vmem:[%s482 + $0x8] sm:$0xff] %vm544, %v578
        $region60: #{tpu_custom_call.1} parent=55 // pred_fallthru
          _
        %v582 = vld [vmem:[%s489] sm:$0xff]
        %v583 = vld [vmem:[%s2] sm:$0xff]
        %v584 = vld [vmem:[%s2 + $0x8] sm:$0xff]
        %v585 = vld [vmem:[%s2 + $0x10] sm:$0xff]
        %v586 = vld [vmem:[%s2 + $0x18] sm:$0xff]
        %v587 = vld [vmem:[%s3] sm:$0x1]
        %v589 = vperm.slane %v587, 0
        %vm591 = vcmask 261120
        %v593 = vsel %vm591, %v582, 0
        %595 = vmatpush.msra.mxu0 0.0
        %596 = vmatpush.msra.mxu0 0.0
        %597 = vmatpush.msra.mxu0 0.0
        %598 = vmatpush.msra.mxu0 0.0
        %599 = vmatpush.msra.mxu0 0.0
        %600 = vmatpush.msra.mxu0 0.0
        %601 = vmatpush.msra.mxu0 0.0
        %602 = vmatpush.msra.mxu0 0.0
        %603 = vmatpush.msra.mxu0 0.0
        %604 = vmatpush.msra.mxu0 0.0
        %605 = vmatpush.msra.mxu0 0.0
        %606 = vmatpush.msra.mxu0 0.0
        %607 = vmatpush.msra.mxu0 %v586
        %608 = vmatpush.msra.mxu0 %v585
        %609 = vmatpush.msra.mxu0 %v584
        %610 = vmatpush.msra.mxu0 %v583
        %611 = vmatmul.f32.gmra.mxu0 %v593
        %v612 = vpop.f32.mrf.mxu0
        %v613 = vadd.f32 %v589, %v612
        %614 = vdwg.mxu0
        %v615 = vmul.f32 %v613, 0.35355338
        %v616 = vld [vmem:[%s475] sm:$0xff]
        %v617 = vld [vmem:[%s475 + $0x8] sm:$0xff]
        %v618 = vld [vmem:[%s482] sm:$0xff]
        %v619 = vld [vmem:[%s482 + $0x8] sm:$0xff]
        %v620 = vld [vmem:[%s497] sm:$0x1]
        %v622 = vperm.slane %v620, 0
        %vm624 = vcmask 64512
        %v626 = vsel %vm624, %v615, 0
        %v629 = vsel %vm624, %v616, 0
        %v632 = vsel %vm624, %v617, 0
        %634 = vmatpush.xpose.msra.mxu0 0.0
        %635 = vmatpush.xpose.msra.mxu0 0.0
        %636 = vmatpush.xpose.msra.mxu0 0.0
        %637 = vmatpush.xpose.msra.mxu0 0.0
        %638 = vmatpush.xpose.msra.mxu0 0.0
        %639 = vmatpush.xpose.msra.mxu0 0.0
        %640 = vmatpush.xpose.msra.mxu0 0.0
        %641 = vmatpush.xpose.msra.mxu0 0.0
        %642 = vmatpush.xpose.msra.mxu0 0.0
        %643 = vmatpush.xpose.msra.mxu0 0.0
        %644 = vmatpush.xpose.msra.mxu0 0.0
        %645 = vmatpush.xpose.msra.mxu0 0.0
        %646 = vmatpush.xpose.msra.mxu0 0.0
        %647 = vmatpush.xpose.msra.mxu0 0.0
        %648 = vmatpush.xpose.msra.mxu0 %v632
        %649 = vmatpush.xpose.msra.mxu0 %v629
        %650 = vmatmul.f32.gmra.mxu0 %v626
        %v651 = vpop.f32.mrf.mxu0
        %v652 = vadd.f32 %v622, %v651
        %653 = vdwg.mxu0
        %vm654 = vcmask 130048
        %v655 = vsel %vm654, %v652, -inf
        %656 = vmax.xlane.f32.xlu0 %v655
        %v657 = vpop.xlane.xlu0 %656
        %v658 = vsub.f32 %v652, %v657
        %v659 = vmul.f32 %v658, 1.442695
        %v660 = vpow.pop %v659
        %v661 = vsel %vm654, %v660, 0.0
        %662 = vadd.xlane.f32.xlu0 %v661
        %v663 = vpop.xlane.xlu0 %662
        %v664 = vrcp.pop %v663
        %v665 = vmul.f32 %v660, %v664
        %666 = vst.msk [vmem:[%s468] sm:$0xff] %vm654, %v665
        %v668 = vsel %vm654, %v665, 0
        %670 = vmatpush.msra.mxu0 0.0
        %671 = vmatpush.msra.mxu0 0.0
        %672 = vmatpush.msra.mxu0 0.0
        %673 = vmatpush.msra.mxu0 0.0
        %674 = vmatpush.msra.mxu0 0.0
        %675 = vmatpush.msra.mxu0 0.0
        %676 = vmatpush.msra.mxu0 0.0
        %677 = vmatpush.msra.mxu0 0.0
        %678 = vmatpush.msra.mxu0 0.0
        %679 = vmatpush.msra.mxu0 0.0
        %680 = vmatpush.msra.mxu0 0.0
        %681 = vmatpush.msra.mxu0 0.0
        %682 = vmatpush.msra.mxu0 0.0
        %683 = vmatpush.msra.mxu0 0.0
        %684 = vmatpush.msra.mxu0 %v619
        %685 = vmatpush.msra.mxu0 %v618
        %686 = vmatmul.f32.gmra.mxu0 %v668
        %v687 = vpop.f32.mrf.mxu0
        %v688 = vadd.f32 0.0, %v687
        %689 = vdwg.mxu0
        %690 = vrot.lane.b32.xlu0 %v615, 120
        %v691 = vpop.permute.xlu0 %690
        %692 = vrot.lane.b32.xlu0 %v616, 120
        %v693 = vpop.permute.xlu0 %692
        %694 = vrot.lane.b32.xlu0 %v617, 120
        %v695 = vpop.permute.xlu0 %694
        %v696 = vsel %vm624, %v691, 0
        %v698 = vsel %vm624, %v693, 0
        %v700 = vsel %vm624, %v695, 0
        %702 = vmatpush.xpose.msra.mxu0 0.0
        %703 = vmatpush.xpose.msra.mxu0 0.0
        %704 = vmatpush.xpose.msra.mxu0 0.0
        %705 = vmatpush.xpose.msra.mxu0 0.0
        %706 = vmatpush.xpose.msra.mxu0 0.0
        %707 = vmatpush.xpose.msra.mxu0 0.0
        %708 = vmatpush.xpose.msra.mxu0 0.0
        %709 = vmatpush.xpose.msra.mxu0 0.0
        %710 = vmatpush.xpose.msra.mxu0 0.0
        %711 = vmatpush.xpose.msra.mxu0 0.0
        %712 = vmatpush.xpose.msra.mxu0 0.0
        %713 = vmatpush.xpose.msra.mxu0 0.0
        %714 = vmatpush.xpose.msra.mxu0 0.0
        %715 = vmatpush.xpose.msra.mxu0 0.0
        %716 = vmatpush.xpose.msra.mxu0 %v700
        %717 = vmatpush.xpose.msra.mxu0 %v698
        %718 = vmatmul.f32.gmra.mxu0 %v696
        %v719 = vpop.f32.mrf.mxu0
        %v720 = vadd.f32 %v622, %v719
        %721 = vdwg.mxu0
        %v722 = vsel %vm654, %v720, -inf
        %723 = vmax.xlane.f32.xlu0 %v722
        %v724 = vpop.xlane.xlu0 %723
        %v725 = vsub.f32 %v720, %v724
        %v726 = vmul.f32 %v725, 1.442695
        %v727 = vpow.pop %v726
        %v728 = vsel %vm654, %v727, 0.0
        %729 = vadd.xlane.f32.xlu0 %v728
        %v730 = vpop.xlane.xlu0 %729
        %v731 = vrcp.pop %v730
        %v732 = vmul.f32 %v727, %v731
        %s733 = scalar_lea.vmem %s468, 8 [#allocation4]
        %734 = vst.msk [vmem:[%s733] sm:$0xff] %vm654, %v732
        %737 = vrot.lane.b32.xlu0 %v618, 120
        %v738 = vpop.permute.xlu0 %737
        %739 = vrot.lane.b32.xlu0 %v619, 120
        %v740 = vpop.permute.xlu0 %739
        %v744 = vsel %vm654, %v732, 0
        %746 = vmatpush.msra.mxu0 0.0
        %747 = vmatpush.msra.mxu0 0.0
        %748 = vmatpush.msra.mxu0 0.0
        %749 = vmatpush.msra.mxu0 0.0
        %750 = vmatpush.msra.mxu0 0.0
        %751 = vmatpush.msra.mxu0 0.0
        %752 = vmatpush.msra.mxu0 0.0
        %753 = vmatpush.msra.mxu0 0.0
        %754 = vmatpush.msra.mxu0 0.0
        %755 = vmatpush.msra.mxu0 0.0
        %756 = vmatpush.msra.mxu0 0.0
        %757 = vmatpush.msra.mxu0 0.0
        %758 = vmatpush.msra.mxu0 0.0
        %759 = vmatpush.msra.mxu0 0.0
        %760 = vmatpush.msra.mxu0 %v740
        %761 = vmatpush.msra.mxu0 %v738
        %762 = vmatmul.f32.gmra.mxu0 %v744
        %v763 = vpop.f32.mrf.mxu0
        %v764 = vadd.f32 0.0, %v763
        %765 = vdwg.mxu0
        %766 = vrot.lane.b32.xlu0 %v615, 112
        %v767 = vpop.permute.xlu0 %766
        %768 = vrot.lane.b32.xlu0 %v616, 112
        %v769 = vpop.permute.xlu0 %768
        %770 = vrot.lane.b32.xlu0 %v617, 112
        %v771 = vpop.permute.xlu0 %770
        %v772 = vsel %vm624, %v767, 0
        %v774 = vsel %vm624, %v769, 0
        %v776 = vsel %vm624, %v771, 0
        %778 = vmatpush.xpose.msra.mxu0 0.0
        %779 = vmatpush.xpose.msra.mxu0 0.0
        %780 = vmatpush.xpose.msra.mxu0 0.0
        %781 = vmatpush.xpose.msra.mxu0 0.0
        %782 = vmatpush.xpose.msra.mxu0 0.0
        %783 = vmatpush.xpose.msra.mxu0 0.0
        %784 = vmatpush.xpose.msra.mxu0 0.0
        %785 = vmatpush.xpose.msra.mxu0 0.0
        %786 = vmatpush.xpose.msra.mxu0 0.0
        %787 = vmatpush.xpose.msra.mxu0 0.0
        %788 = vmatpush.xpose.msra.mxu0 0.0
        %789 = vmatpush.xpose.msra.mxu0 0.0
        %790 = vmatpush.xpose.msra.mxu0 0.0
        %791 = vmatpush.xpose.msra.mxu0 0.0
        %792 = vmatpush.xpose.msra.mxu0 %v776
        %793 = vmatpush.xpose.msra.mxu0 %v774
        %794 = vmatmul.f32.gmra.mxu0 %v772
        %v795 = vpop.f32.mrf.mxu0
        %v796 = vadd.f32 %v622, %v795
        %797 = vdwg.mxu0
        %v798 = vsel %vm654, %v796, -inf
        %799 = vmax.xlane.f32.xlu0 %v798
        %v800 = vpop.xlane.xlu0 %799
        %v801 = vsub.f32 %v796, %v800
        %v802 = vmul.f32 %v801, 1.442695
        %v803 = vpow.pop %v802
        %v804 = vsel %vm654, %v803, 0.0
        %805 = vadd.xlane.f32.xlu0 %v804
        %v806 = vpop.xlane.xlu0 %805
        %v807 = vrcp.pop %v806
        %v808 = vmul.f32 %v803, %v807
        %s809 = scalar_lea.vmem %s468, 16 [#allocation4]
        %810 = vst.msk [vmem:[%s809] sm:$0xff] %vm654, %v808
        %811 = vrot.lane.b32.xlu0 %v618, 112
        %v812 = vpop.permute.xlu0 %811
        %813 = vrot.lane.b32.xlu0 %v619, 112
        %v814 = vpop.permute.xlu0 %813
        %v818 = vsel %vm654, %v808, 0
        %820 = vmatpush.msra.mxu0 0.0
        %821 = vmatpush.msra.mxu0 0.0
        %822 = vmatpush.msra.mxu0 0.0
        %823 = vmatpush.msra.mxu0 0.0
        %824 = vmatpush.msra.mxu0 0.0
        %825 = vmatpush.msra.mxu0 0.0
        %826 = vmatpush.msra.mxu0 0.0
        %827 = vmatpush.msra.mxu0 0.0
        %828 = vmatpush.msra.mxu0 0.0
        %829 = vmatpush.msra.mxu0 0.0
        %830 = vmatpush.msra.mxu0 0.0
        %831 = vmatpush.msra.mxu0 0.0
        %832 = vmatpush.msra.mxu0 0.0
        %833 = vmatpush.msra.mxu0 0.0
        %834 = vmatpush.msra.mxu0 %v814
        %835 = vmatpush.msra.mxu0 %v812
        %836 = vmatmul.f32.gmra.mxu0 %v818
        %v837 = vpop.f32.mrf.mxu0
        %v838 = vadd.f32 0.0, %v837
        %839 = vdwg.mxu0
        %840 = vrot.lane.b32.xlu0 %v615, 104
        %v841 = vpop.permute.xlu0 %840
        %842 = vrot.lane.b32.xlu0 %v616, 104
        %v843 = vpop.permute.xlu0 %842
        %844 = vrot.lane.b32.xlu0 %v617, 104
        %v845 = vpop.permute.xlu0 %844
        %v846 = vsel %vm624, %v841, 0
        %v848 = vsel %vm624, %v843, 0
        %v850 = vsel %vm624, %v845, 0
        %852 = vmatpush.xpose.msra.mxu0 0.0
        %853 = vmatpush.xpose.msra.mxu0 0.0
        %854 = vmatpush.xpose.msra.mxu0 0.0
        %855 = vmatpush.xpose.msra.mxu0 0.0
        %856 = vmatpush.xpose.msra.mxu0 0.0
        %857 = vmatpush.xpose.msra.mxu0 0.0
        %858 = vmatpush.xpose.msra.mxu0 0.0
        %859 = vmatpush.xpose.msra.mxu0 0.0
        %860 = vmatpush.xpose.msra.mxu0 0.0
        %861 = vmatpush.xpose.msra.mxu0 0.0
        %862 = vmatpush.xpose.msra.mxu0 0.0
        %863 = vmatpush.xpose.msra.mxu0 0.0
        %864 = vmatpush.xpose.msra.mxu0 0.0
        %865 = vmatpush.xpose.msra.mxu0 0.0
        %866 = vmatpush.xpose.msra.mxu0 %v850
        %867 = vmatpush.xpose.msra.mxu0 %v848
        %868 = vmatmul.f32.gmra.mxu0 %v846
        %v869 = vpop.f32.mrf.mxu0
        %v870 = vadd.f32 %v622, %v869
        %871 = vdwg.mxu0
        %v872 = vsel %vm654, %v870, -inf
        %873 = vmax.xlane.f32.xlu0 %v872
        %v874 = vpop.xlane.xlu0 %873
        %v875 = vsub.f32 %v870, %v874
        %v876 = vmul.f32 %v875, 1.442695
        %v877 = vpow.pop %v876
        %v878 = vsel %vm654, %v877, 0.0
        %879 = vadd.xlane.f32.xlu0 %v878
        %v880 = vpop.xlane.xlu0 %879
        %v881 = vrcp.pop %v880
        %v882 = vmul.f32 %v877, %v881
        %s883 = scalar_lea.vmem %s468, 24 [#allocation4]
        %884 = vst.msk [vmem:[%s883] sm:$0xff] %vm654, %v882
        %885 = vrot.lane.b32.xlu0 %v618, 104
        %v886 = vpop.permute.xlu0 %885
        %887 = vrot.lane.b32.xlu0 %v619, 104
        %v888 = vpop.permute.xlu0 %887
        %v892 = vsel %vm654, %v882, 0
        %894 = vmatpush.msra.mxu0 0.0
        %895 = vmatpush.msra.mxu0 0.0
        %896 = vmatpush.msra.mxu0 0.0
        %897 = vmatpush.msra.mxu0 0.0
        %898 = vmatpush.msra.mxu0 0.0
        %899 = vmatpush.msra.mxu0 0.0
        %900 = vmatpush.msra.mxu0 0.0
        %901 = vmatpush.msra.mxu0 0.0
        %902 = vmatpush.msra.mxu0 0.0
        %903 = vmatpush.msra.mxu0 0.0
        %904 = vmatpush.msra.mxu0 0.0
        %905 = vmatpush.msra.mxu0 0.0
        %906 = vmatpush.msra.mxu0 0.0
        %907 = vmatpush.msra.mxu0 0.0
        %908 = vmatpush.msra.mxu0 %v888
        %909 = vmatpush.msra.mxu0 %v886
        %910 = vmatmul.f32.gmra.mxu0 %v892
        %v911 = vpop.f32.mrf.mxu0
        %v912 = vadd.f32 0.0, %v911
        %913 = vdwg.mxu0
        %915 = vrot.lane.b32.xlu0 %v764, 8
        %v916 = vpop.permute.xlu0 %915
        %919 = vrot.lane.b32.xlu0 %v838, 16
        %v920 = vpop.permute.xlu0 %919
        %923 = vrot.lane.b32.xlu0 %v912, 24
        %v924 = vpop.permute.xlu0 %923
        %v926 = vsel %vm624, %v688, %v916
        %v927 = vsel %vm654, %v926, %v920
        %vm928 = vcmask 195584
        %v929 = vsel %vm928, %v927, %v924
        %930 = vst.msk [vmem:[%s461] sm:$0xff] %vm591, %v929
        %s931 = sand.u32 %s261, 1
        %s932 = scalar_lea.sflag [#allocation3], %s931
        %s933 = sand.u32 %s261, 1
        %s934 = smul.addr %s933, 8
        %s935 = scalar_lea.vmem [#allocation2], %s934
        %s936 = sand.u32 %s33, 1
        %s937 = scalar_lea.sflag [#allocation5], %s936
        %s938 = sand.u32 %s289, 1
        %s939 = smul.addr %s938, 32
        %s940 = scalar_lea.vmem [#allocation4], %s939
        %s941 = sand.u32 %s33, 1
        %s942 = scalar_lea.sflag [#allocation5], %s941
        %s943 = sand.u32 %s315, 1
        %s944 = smul.addr %s943, 16
        %s945 = scalar_lea.vmem [#allocation6], %s944
        %s946 = sand.u32 %s341, 1
        %s947 = scalar_lea.sflag [#allocation8], %s946
        %s948 = sand.u32 %s341, 1
        %s949 = smul.addr %s948, 16
        %s950 = scalar_lea.vmem [#allocation7], %s949
        // Predicated region
        $region61: #{tpu_custom_call.1} parent=55 // pred_check
          %p951 = pneg %p271
        $region62: #{tpu_custom_call.1} parent=55 // pred_check_branch
          %953 = sbr.rel (%p951) target = $region64
        $region63: #{tpu_custom_call.1} parent=55 // pred_region
          %955 = vsyncadd %s932, 0
          %s956 = sadd.s32 %s38, %s37
          %s957 = smul.addr %s956, 8
          %s958 = scalar_lea.hbm %s9, %s957
          %s960 = sshll.u32 %s935, 4
          %s961 = int_to_ptr.vmem [resolvable:$true] %s960
          %s962 = sshll.u32 %s958, 4
          %s963 = int_to_ptr.hbm [resolvable:$true] %s962
          %965 = dma.vmem_to_hbm [thread:$0]  %s961, 128, %s963, %s932
        $region64: #{tpu_custom_call.1} parent=55 // pred_fallthru
          _
        // Predicated region
        $region65: #{tpu_custom_call.1} parent=55 // pred_check
          %p966 = pneg %p299
        $region66: #{tpu_custom_call.1} parent=55 // pred_check_branch
          %968 = sbr.rel (%p966) target = $region68
        $region67: #{tpu_custom_call.1} parent=55 // pred_region
          %970 = vsyncadd %s937, 0
          %s971 = smul.addr %s37, 4
          %s972 = sadd.s32 %s38, %s971
          %s973 = smul.addr %s972, 8
          %s974 = scalar_lea.hbm %s10, %s973
          %s975 = sshll.u32 %s940, 4
          %s976 = int_to_ptr.vmem [resolvable:$true] %s975
          %s977 = sshll.u32 %s974, 4
          %s978 = int_to_ptr.hbm [resolvable:$true] %s977
          %983 = dma.vmem_to_hbm [thread:$0]  %s976, 512, %s978, %s937, 128, 128, 8
        $region68: #{tpu_custom_call.1} parent=55 // pred_fallthru
          _
        // Predicated region
        $region69: #{tpu_custom_call.1} parent=55 // pred_check
          %p984 = pneg %p325
        $region70: #{tpu_custom_call.1} parent=55 // pred_check_branch
          %986 = sbr.rel (%p984) target = $region72
        $region71: #{tpu_custom_call.1} parent=55 // pred_region
          %988 = vsyncadd %s942, 0
          %s989 = smul.addr %s37, 2
          %s990 = smul.addr %s989, 8
          %s991 = scalar_lea.hbm %s11, %s990
          %s992 = sshll.u32 %s945, 4
          %s993 = int_to_ptr.vmem [resolvable:$true] %s992
          %s994 = sshll.u32 %s991, 4
          %s995 = int_to_ptr.hbm [resolvable:$true] %s994
          %1000 = dma.vmem_to_hbm [thread:$0]  %s993, 256, %s995, %s942, 128, 128, 8
        $region72: #{tpu_custom_call.1} parent=55 // pred_fallthru
          _
        // Predicated region
        $region73: #{tpu_custom_call.1} parent=55 // pred_check
          %p1001 = pneg %p351
        $region74: #{tpu_custom_call.1} parent=55 // pred_check_branch
          %1003 = sbr.rel (%p1001) target = $region76
        $region75: #{tpu_custom_call.1} parent=55 // pred_region
          %1005 = vsyncadd %s947, 0
          %s1006 = smul.addr %s37, 2
          %s1007 = smul.addr %s1006, 8
          %s1008 = scalar_lea.hbm %s12, %s1007
          %s1009 = sshll.u32 %s950, 4
          %s1010 = int_to_ptr.vmem [resolvable:$true] %s1009
          %s1011 = sshll.u32 %s1008, 4
          %s1012 = int_to_ptr.hbm [resolvable:$true] %s1011
          %1017 = dma.vmem_to_hbm [thread:$0]  %s1010, 256, %s1012, %s947, 128, 128, 8
        $region76: #{tpu_custom_call.1} parent=55 // pred_fallthru
          _
      $region56: #{tpu_custom_call.1} parent=5 // pred_fallthru
        _
      %p1018 = scmp.le.s32.totalorder 2, %s28
      // Predicated region
      $region77: #{tpu_custom_call.1} parent=5 // pred_check
        %p1019 = pneg %p1018
      $region78: #{tpu_custom_call.1} parent=5 // pred_check_branch
        %1021 = sbr.rel (%p1019) target = $region80
      $region79: #{tpu_custom_call.1} parent=5 // pred_region
        %s1022 = ssub.s32 %s28, 2
        // Predicated region
        $region81: #{tpu_custom_call.1} parent=79 // pred_check
          %p1023 = pneg %p277
        $region82: #{tpu_custom_call.1} parent=79 // pred_check_branch
          %1025 = sbr.rel (%p1023) target = $region84
        $region83: #{tpu_custom_call.1} parent=79 // pred_region
          %s1026 = sand.u32 %s262, 1
          %s1027 = scalar_lea.sflag [#allocation3], %s1026
          %s1028 = sand.u32 %s262, 1
          %s1029 = smul.addr %s1028, 8
          %s1030 = scalar_lea.vmem [#allocation2], %s1029
          %1032 = dma.done %s1027, 128
        $region84: #{tpu_custom_call.1} parent=79 // pred_fallthru
          _
        // Predicated region
        $region85: #{tpu_custom_call.1} parent=79 // pred_check
          %p1033 = pneg %p305
        $region86: #{tpu_custom_call.1} parent=79 // pred_check_branch
          %1035 = sbr.rel (%p1033) target = $region88
        $region87: #{tpu_custom_call.1} parent=79 // pred_region
          %s1036 = sand.u32 %s34, 1
          %s1037 = scalar_lea.sflag [#allocation5], %s1036
          %s1038 = sand.u32 %s290, 1
          %s1039 = smul.addr %s1038, 32
          %s1040 = scalar_lea.vmem [#allocation4], %s1039
          %1042 = dma.done %s1037, 512
        $region88: #{tpu_custom_call.1} parent=79 // pred_fallthru
          _
        // Predicated region
        $region89: #{tpu_custom_call.1} parent=79 // pred_check
          %p1043 = pneg %p331
        $region90: #{tpu_custom_call.1} parent=79 // pred_check_branch
          %1045 = sbr.rel (%p1043) target = $region92
        $region91: #{tpu_custom_call.1} parent=79 // pred_region
          %s1046 = sand.u32 %s34, 1
          %s1047 = scalar_lea.sflag [#allocation5], %s1046
          %s1048 = sand.u32 %s316, 1
          %s1049 = smul.addr %s1048, 16
          %s1050 = scalar_lea.vmem [#allocation6], %s1049
          %1052 = dma.done %s1047, 256
        $region92: #{tpu_custom_call.1} parent=79 // pred_fallthru
          _
        // Predicated region
        $region93: #{tpu_custom_call.1} parent=79 // pred_check
          %p1053 = pneg %p357
        $region94: #{tpu_custom_call.1} parent=79 // pred_check_branch
          %1055 = sbr.rel (%p1053) target = $region96
        $region95: #{tpu_custom_call.1} parent=79 // pred_region
          %s1056 = sand.u32 %s342, 1
          %s1057 = scalar_lea.sflag [#allocation8], %s1056
          %s1058 = sand.u32 %s342, 1
          %s1059 = smul.addr %s1058, 16
          %s1060 = scalar_lea.vmem [#allocation7], %s1059
          %1062 = dma.done %s1057, 256
        $region96: #{tpu_custom_call.1} parent=79 // pred_fallthru
          _
      $region80: #{tpu_custom_call.1} parent=5 // pred_fallthru
        _
    $region6: #{tpu_custom_call.1} parent=1 // loop_footer
      %s32 = sadd.s32 1, %s28
    $region7: #{tpu_custom_call.1} parent=1 // loop_footer_branch
      %27 = sbr.rel target = $region3
    $region8: #{tpu_custom_call.1} parent=1 // loop_exit
      _
    %1063 = vsyncpa [#allocation3], 1
    %s1064 = scalar_lea.sflag [#allocation3], 1
    %1065 = vsyncpa %s1064, 1
    %1066 = vsyncpa [#allocation5], 1
    %s1067 = scalar_lea.sflag [#allocation5], 1
    %1068 = vsyncpa %s1067, 1
    %1069 = vsyncpa [#allocation8], 1
    %s1070 = scalar_lea.sflag [#allocation8], 1
    %1071 = vsyncpa %s1070, 1

// kernel: tpu_custom_call.1
$region0: #{tpu_custom_call.1}
  #allocation0 [shape = 'u32[]', space=smem, size = 0x4, offset = 0x4, fixed_abs, tag = 'smem constant byte address 0x4 - core index']
  #allocation1 [shape = 'u32[72,128]{1,0:T(1,128)}', space=vmem, size = 0x9000, scoped, tag = 'internal scratch']
  %s0 = inlined_call_operand.vmem [shape: f32[2,8,32], index: 0, kind: input, shape index: {}]
  %s1 = inlined_call_operand.vmem [shape: f32[2,16,48], index: 1, kind: input, shape index: {}]
  %s2 = inlined_call_operand.vmem [shape: f32[32,32], index: 2, kind: input, shape index: {}]
  %s3 = inlined_call_operand.vmem [shape: f32[1,32], index: 3, kind: input, shape index: {}]
  %s4 = inlined_call_operand.vmem [shape: f32[48,32], index: 4, kind: input, shape index: {}]
  %s5 = inlined_call_operand.vmem [shape: f32[1,32], index: 5, kind: input, shape index: {}]
  %s6 = inlined_call_operand.vmem [shape: f32[48,32], index: 6, kind: input, shape index: {}]
  %s7 = inlined_call_operand.vmem [shape: f32[1,32], index: 7, kind: input, shape index: {}]
  %s8 = inlined_call_operand.vmem [shape: f32[2,1,16], index: 8, kind: input, shape index: {}]
  %s9 = inlined_call_operand.hbm [shape: f32[2,8,32], index: 9, kind: output, shape index: {0}]
  %s10 = inlined_call_operand.hbm [shape: f32[2,4,8,16], index: 10, kind: output, shape index: {1}]
  %s11 = inlined_call_operand.hbm [shape: f32[2,16,32], index: 11, kind: output, shape index: {2}]
  %s12 = inlined_call_operand.hbm [shape: f32[2,16,32], index: 12, kind: output, shape index: {3}]
  %13 = xla_tuple %s9, %s10, %s11, %s12
  %s14 = sld [smem:[#allocation0]]
  $region97: #{tpu_custom_call.1} parent=0
    _
  %s16 = ssub.s32 1, %s14
  %s17 = scalar_select 0, %s16, %s14
  $region1: #{tpu_custom_call.1} parent=0
    #allocation2 [shape = 'u8[8192]{0}', space=vmem, size = 0x2000, scoped, tag = 'output window, operand 0']
    #allocation3 [shape = 's32[2]{0}', space=sflag, size = 0x8, scoped, tag = 'scoped memory for tpu_custom_call.1']
    #allocation4 [shape = 'u8[32768]{0}', space=vmem, size = 0x8000, scoped, tag = 'output window, operand 1']
    #allocation5 [shape = 's32[2]{0}', space=sflag, size = 0x8, scoped, tag = 'scoped memory for tpu_custom_call.1']
    #allocation6 [shape = 'u8[16384]{0}', space=vmem, size = 0x4000, scoped, tag = 'output window, operand 2']
    #allocation7 [shape = 'u8[16384]{0}', space=vmem, size = 0x4000, scoped, tag = 'output window, operand 3']
    #allocation8 [shape = 's32[2]{0}', space=sflag, size = 0x8, scoped, tag = 'scoped memory for tpu_custom_call.1']
    %18 = vsyncpa [#allocation3], 0
    %s19 = scalar_lea.sflag [#allocation3], 1
    %20 = vsyncpa %s19, 0
    %21 = vsyncpa [#allocation5], 0
    %s22 = scalar_lea.sflag [#allocation5], 1
    %23 = vsyncpa %s22, 0
    %24 = vsyncpa [#allocation8], 0
    %s25 = scalar_lea.sflag [#allocation8], 1
    %26 = vsyncpa %s25, 0
    loop: start=0, step=1, limit=4
    $region2: #{tpu_custom_call.1} parent=1 // loop_pre_header
      _
    $region3: #{tpu_custom_call.1} parent=1 // loop_header
      %s28 = sphi 0, %s32
      %p29 = scmp.ge.s32.totalorder %s28, 4
      %s35 = sphi 0, %s47
      %s36 = sphi 0, %s43
      %s37 = sphi 0, %s35
      %s38 = sphi 0, %s36
      %s39 = sphi 0, %s37
      %s40 = sphi 0, %s38
      %s52 = sphi 0, %s54
      %s55 = sphi 0, %s52
      %s56 = sphi 0, %s55
      %s72 = sphi 0, %s56
      %s78 = sphi 0, %s80
      %s81 = sphi 0, %s78
      %s82 = sphi 0, %s81
      %s98 = sphi 0, %s82
      %s102 = sphi 0, %s102
      %s104 = sphi 0, %s102
      %s105 = sphi 0, %s104
      %s119 = sphi 0, %s105
      %s123 = sphi 0, %s123
      %s125 = sphi 0, %s123
      %s126 = sphi 0, %s125
      %s140 = sphi 0, %s126
      %s144 = sphi 0, %s144
      %s146 = sphi 0, %s144
      %s147 = sphi 0, %s146
      %s161 = sphi 0, %s147
      %s165 = sphi 0, %s165
      %s167 = sphi 0, %s165
      %s168 = sphi 0, %s167
      %s182 = sphi 0, %s168
      %s186 = sphi 0, %s186
      %s188 = sphi 0, %s186
      %s189 = sphi 0, %s188
      %s203 = sphi 0, %s189
      %s207 = sphi 0, %s207
      %s209 = sphi 0, %s207
      %s210 = sphi 0, %s209
      %s224 = sphi 0, %s210
      %s230 = sphi 0, %s232
      %s233 = sphi 0, %s230
      %s234 = sphi 0, %s233
      %s250 = sphi 0, %s234
      %s258 = sphi 0, %s260
      %s261 = sphi 0, %s258
      %s262 = sphi 0, %s261
      %s278 = sphi 0, %s262
      %s286 = sphi 0, %s288
      %s289 = sphi 0, %s286
      %s290 = sphi 0, %s289
      %s306 = sphi 0, %s290
      %s312 = sphi 0, %s314
      %s315 = sphi 0, %s312
      %s316 = sphi 0, %s315
      %s332 = sphi 0, %s316
      %s338 = sphi 0, %s340
      %s341 = sphi 0, %s338
      %s342 = sphi 0, %s341
      %s358 = sphi 0, %s342
    $region4: #{tpu_custom_call.1} parent=1 // loop_header_branch
      %31 = sbr.rel (%p29) target = $region8
    $region5: #{tpu_custom_call.1} parent=1 // loop_body
      %s33 = ssub.s32 %s28, 1
      %s34 = ssub.s32 %s28, 2
      %s41 = sadd.s32 1, %s36
      %p42 = scmp.ge.s32.totalorder %s41, 1
      %s43 = scalar_select %p42, 0, %s41
      %s44 = sadd.s32 1, %s35
      %s45 = scalar_select %p42, %s44, %s35
      %p46 = scmp.ge.s32.totalorder %s45, 2
      %s47 = scalar_select %p46, 0, %s45
      %s48 = ssub.s32 %s35, %s47
      %s49 = ssub.s32 %s36, %s43
      %s50 = sor.u32 %s48, %s49
      %p51 = scmp.eq.s32.totalorder %s50, 0
      %s53 = sadd.s32 %s52, 1
      %s54 = scalar_select %p51, %s52, %s53
      %p57 = pneg %p51
      %p58 = scmp.eq.s32.totalorder %s28, 1
      %p59 = por %p57, %p58
      %p60 = scmp.ne.s32.totalorder %s52, %s55
      %p61 = scmp.eq.s32.totalorder %s28, 0
      %p62 = por %p60, %p61
      %p63 = scmp.ne.s32.totalorder %s52, %s55
      %p64 = scmp.eq.s32.totalorder %s33, 1
      %p65 = por %p63, %p64
      %p66 = scmp.ne.s32.totalorder %s55, %s56
      %p67 = scmp.eq.s32.totalorder %s33, 0
      %p68 = por %p66, %p67
      %p69 = scmp.ne.s32.totalorder %s55, %s56
      %p70 = scmp.eq.s32.totalorder %s34, 1
      %p71 = por %p69, %p70
      %p73 = scmp.ne.s32.totalorder %s56, %s72
      %p74 = scmp.eq.s32.totalorder %s34, 0
      %p75 = por %p73, %p74
      %s76 = ssub.s32 %s35, %s47
      %p77 = scmp.eq.s32.totalorder %s76, 0
      %s79 = sadd.s32 %s78, 1
      %s80 = scalar_select %p77, %s78, %s79
      %p83 = pneg %p77
      %p84 = scmp.eq.s32.totalorder %s28, 1
      %p85 = por %p83, %p84
      %p86 = scmp.ne.s32.totalorder %s78, %s81
      %p87 = scmp.eq.s32.totalorder %s28, 0
      %p88 = por %p86, %p87
      %p89 = scmp.ne.s32.totalorder %s78, %s81
      %p90 = scmp.eq.s32.totalorder %s33, 1
      %p91 = por %p89, %p90
      %p92 = scmp.ne.s32.totalorder %s81, %s82
      %p93 = scmp.eq.s32.totalorder %s33, 0
      %p94 = por %p92, %p93
      %p95 = scmp.ne.s32.totalorder %s81, %s82
      %p96 = scmp.eq.s32.totalorder %s34, 1
      %p97 = por %p95, %p96
      %p99 = scmp.ne.s32.totalorder %s82, %s98
      %p100 = scmp.eq.s32.totalorder %s34, 0
      %p101 = por %p99, %p100
      %s103 = sadd.s32 %s102, 1
      %p106 = scmp.eq.s32.totalorder %s28, 1
      %p107 = scmp.ne.s32.totalorder %s102, %s104
      %p108 = scmp.eq.s32.totalorder %s28, 0
      %p109 = por %p107, %p108
      %p110 = scmp.ne.s32.totalorder %s102, %s104
      %p111 = scmp.eq.s32.totalorder %s33, 1
      %p112 = por %p110, %p111
      %p113 = scmp.ne.s32.totalorder %s104, %s105
      %p114 = scmp.eq.s32.totalorder %s33, 0
      %p115 = por %p113, %p114
      %p116 = scmp.ne.s32.totalorder %s104, %s105
      %p117 = scmp.eq.s32.totalorder %s34, 1
      %p118 = por %p116, %p117
      %p120 = scmp.ne.s32.totalorder %s105, %s119
      %p121 = scmp.eq.s32.totalorder %s34, 0
      %p122 = por %p120, %p121
      %s124 = sadd.s32 %s123, 1
      %p127 = scmp.eq.s32.totalorder %s28, 1
      %p128 = scmp.ne.s32.totalorder %s123, %s125
      %p129 = scmp.eq.s32.totalorder %s28, 0
      %p130 = por %p128, %p129
      %p131 = scmp.ne.s32.totalorder %s123, %s125
      %p132 = scmp.eq.s32.totalorder %s33, 1
      %p133 = por %p131, %p132
      %p134 = scmp.ne.s32.totalorder %s125, %s126
      %p135 = scmp.eq.s32.totalorder %s33, 0
      %p136 = por %p134, %p135
      %p137 = scmp.ne.s32.totalorder %s125, %s126
      %p138 = scmp.eq.s32.totalorder %s34, 1
      %p139 = por %p137, %p138
      %p141 = scmp.ne.s32.totalorder %s126, %s140
      %p142 = scmp.eq.s32.totalorder %s34, 0
      %p143 = por %p141, %p142
      %s145 = sadd.s32 %s144, 1
      %p148 = scmp.eq.s32.totalorder %s28, 1
      %p149 = scmp.ne.s32.totalorder %s144, %s146
      %p150 = scmp.eq.s32.totalorder %s28, 0
      %p151 = por %p149, %p150
      %p152 = scmp.ne.s32.totalorder %s144, %s146
      %p153 = scmp.eq.s32.totalorder %s33, 1
      %p154 = por %p152, %p153
      %p155 = scmp.ne.s32.totalorder %s146, %s147
      %p156 = scmp.eq.s32.totalorder %s33, 0
      %p157 = por %p155, %p156
      %p158 = scmp.ne.s32.totalorder %s146, %s147
      %p159 = scmp.eq.s32.totalorder %s34, 1
      %p160 = por %p158, %p159
      %p162 = scmp.ne.s32.totalorder %s147, %s161
      %p163 = scmp.eq.s32.totalorder %s34, 0
      %p164 = por %p162, %p163
      %s166 = sadd.s32 %s165, 1
      %p169 = scmp.eq.s32.totalorder %s28, 1
      %p170 = scmp.ne.s32.totalorder %s165, %s167
      %p171 = scmp.eq.s32.totalorder %s28, 0
      %p172 = por %p170, %p171
      %p173 = scmp.ne.s32.totalorder %s165, %s167
      %p174 = scmp.eq.s32.totalorder %s33, 1
      %p175 = por %p173, %p174
      %p176 = scmp.ne.s32.totalorder %s167, %s168
      %p177 = scmp.eq.s32.totalorder %s33, 0
      %p178 = por %p176, %p177
      %p179 = scmp.ne.s32.totalorder %s167, %s168
      %p180 = scmp.eq.s32.totalorder %s34, 1
      %p181 = por %p179, %p180
      %p183 = scmp.ne.s32.totalorder %s168, %s182
      %p184 = scmp.eq.s32.totalorder %s34, 0
      %p185 = por %p183, %p184
      %s187 = sadd.s32 %s186, 1
      %p190 = scmp.eq.s32.totalorder %s28, 1
      %p191 = scmp.ne.s32.totalorder %s186, %s188
      %p192 = scmp.eq.s32.totalorder %s28, 0
      %p193 = por %p191, %p192
      %p194 = scmp.ne.s32.totalorder %s186, %s188
      %p195 = scmp.eq.s32.totalorder %s33, 1
      %p196 = por %p194, %p195
      %p197 = scmp.ne.s32.totalorder %s188, %s189
      %p198 = scmp.eq.s32.totalorder %s33, 0
      %p199 = por %p197, %p198
      %p200 = scmp.ne.s32.totalorder %s188, %s189
      %p201 = scmp.eq.s32.totalorder %s34, 1
      %p202 = por %p200, %p201
      %p204 = scmp.ne.s32.totalorder %s189, %s203
      %p205 = scmp.eq.s32.totalorder %s34, 0
      %p206 = por %p204, %p205
      %s208 = sadd.s32 %s207, 1
      %p211 = scmp.eq.s32.totalorder %s28, 1
      %p212 = scmp.ne.s32.totalorder %s207, %s209
      %p213 = scmp.eq.s32.totalorder %s28, 0
      %p214 = por %p212, %p213
      %p215 = scmp.ne.s32.totalorder %s207, %s209
      %p216 = scmp.eq.s32.totalorder %s33, 1
      %p217 = por %p215, %p216
      %p218 = scmp.ne.s32.totalorder %s209, %s210
      %p219 = scmp.eq.s32.totalorder %s33, 0
      %p220 = por %p218, %p219
      %p221 = scmp.ne.s32.totalorder %s209, %s210
      %p222 = scmp.eq.s32.totalorder %s34, 1
      %p223 = por %p221, %p222
      %p225 = scmp.ne.s32.totalorder %s210, %s224
      %p226 = scmp.eq.s32.totalorder %s34, 0
      %p227 = por %p225, %p226
      %s228 = ssub.s32 %s35, %s47
      %p229 = scmp.eq.s32.totalorder %s228, 0
      %s231 = sadd.s32 %s230, 1
      %s232 = scalar_select %p229, %s230, %s231
      %p235 = pneg %p229
      %p236 = scmp.eq.s32.totalorder %s28, 1
      %p237 = por %p235, %p236
      %p238 = scmp.ne.s32.totalorder %s230, %s233
      %p239 = scmp.eq.s32.totalorder %s28, 0
      %p240 = por %p238, %p239
      %p241 = scmp.ne.s32.totalorder %s230, %s233
      %p242 = scmp.eq.s32.totalorder %s33, 1
      %p243 = por %p241, %p242
      %p244 = scmp.ne.s32.totalorder %s233, %s234
      %p245 = scmp.eq.s32.totalorder %s33, 0
      %p246 = por %p244, %p245
      %p247 = scmp.ne.s32.totalorder %s233, %s234
      %p248 = scmp.eq.s32.totalorder %s34, 1
      %p249 = por %p247, %p248
      %p251 = scmp.ne.s32.totalorder %s234, %s250
      %p252 = scmp.eq.s32.totalorder %s34, 0
      %p253 = por %p251, %p252
      %s254 = ssub.s32 %s35, %s47
      %s255 = ssub.s32 %s36, %s43
      %s256 = sor.u32 %s254, %s255
      %p257 = scmp.eq.s32.totalorder %s256, 0
      %s259 = sadd.s32 %s258, 1
      %s260 = scalar_select %p257, %s258, %s259
      %p263 = pneg %p257
      %p264 = scmp.eq.s32.totalorder %s28, 1
      %p265 = por %p263, %p264
      %p266 = scmp.ne.s32.totalorder %s258, %s261
      %p267 = scmp.eq.s32.totalorder %s28, 0
      %p268 = por %p266, %p267
      %p269 = scmp.ne.s32.totalorder %s258, %s261
      %p270 = scmp.eq.s32.totalorder %s33, 1
      %p271 = por %p269, %p270
      %p272 = scmp.ne.s32.totalorder %s261, %s262
      %p273 = scmp.eq.s32.totalorder %s33, 0
      %p274 = por %p272, %p273
      %p275 = scmp.ne.s32.totalorder %s261, %s262
      %p276 = scmp.eq.s32.totalorder %s34, 1
      %p277 = por %p275, %p276
      %p279 = scmp.ne.s32.totalorder %s262, %s278
      %p280 = scmp.eq.s32.totalorder %s34, 0
      %p281 = por %p279, %p280
      %s282 = ssub.s32 %s35, %s47
      %s283 = ssub.s32 %s36, %s43
      %s284 = sor.u32 %s282, %s283
      %p285 = scmp.eq.s32.totalorder %s284, 0
      %s287 = sadd.s32 %s286, 1
      %s288 = scalar_select %p285, %s286, %s287
      %p291 = pneg %p285
      %p292 = scmp.eq.s32.totalorder %s28, 1
      %p293 = por %p291, %p292
      %p294 = scmp.ne.s32.totalorder %s286, %s289
      %p295 = scmp.eq.s32.totalorder %s28, 0
      %p296 = por %p294, %p295
      %p297 = scmp.ne.s32.totalorder %s286, %s289
      %p298 = scmp.eq.s32.totalorder %s33, 1
      %p299 = por %p297, %p298
      %p300 = scmp.ne.s32.totalorder %s289, %s290
      %p301 = scmp.eq.s32.totalorder %s33, 0
      %p302 = por %p300, %p301
      %p303 = scmp.ne.s32.totalorder %s289, %s290
      %p304 = scmp.eq.s32.totalorder %s34, 1
      %p305 = por %p303, %p304
      %p307 = scmp.ne.s32.totalorder %s290, %s306
      %p308 = scmp.eq.s32.totalorder %s34, 0
      %p309 = por %p307, %p308
      %s310 = ssub.s32 %s35, %s47
      %p311 = scmp.eq.s32.totalorder %s310, 0
      %s313 = sadd.s32 %s312, 1
      %s314 = scalar_select %p311, %s312, %s313
      %p317 = pneg %p311
      %p318 = scmp.eq.s32.totalorder %s28, 1
      %p319 = por %p317, %p318
      %p320 = scmp.ne.s32.totalorder %s312, %s315
      %p321 = scmp.eq.s32.totalorder %s28, 0
      %p322 = por %p320, %p321
      %p323 = scmp.ne.s32.totalorder %s312, %s315
      %p324 = scmp.eq.s32.totalorder %s33, 1
      %p325 = por %p323, %p324
      %p326 = scmp.ne.s32.totalorder %s315, %s316
      %p327 = scmp.eq.s32.totalorder %s33, 0
      %p328 = por %p326, %p327
      %p329 = scmp.ne.s32.totalorder %s315, %s316
      %p330 = scmp.eq.s32.totalorder %s34, 1
      %p331 = por %p329, %p330
      %p333 = scmp.ne.s32.totalorder %s316, %s332
      %p334 = scmp.eq.s32.totalorder %s34, 0
      %p335 = por %p333, %p334
      %s336 = ssub.s32 %s35, %s47
      %p337 = scmp.eq.s32.totalorder %s336, 0
      %s339 = sadd.s32 %s338, 1
      %s340 = scalar_select %p337, %s338, %s339
      %p343 = pneg %p337
      %p344 = scmp.eq.s32.totalorder %s28, 1
      %p345 = por %p343, %p344
      %p346 = scmp.ne.s32.totalorder %s338, %s341
      %p347 = scmp.eq.s32.totalorder %s28, 0
      %p348 = por %p346, %p347
      %p349 = scmp.ne.s32.totalorder %s338, %s341
      %p350 = scmp.eq.s32.totalorder %s33, 1
      %p351 = por %p349, %p350
      %p352 = scmp.ne.s32.totalorder %s341, %s342
      %p353 = scmp.eq.s32.totalorder %s33, 0
      %p354 = por %p352, %p353
      %p355 = scmp.ne.s32.totalorder %s341, %s342
      %p356 = scmp.eq.s32.totalorder %s34, 1
      %p357 = por %p355, %p356
      %p359 = scmp.ne.s32.totalorder %s342, %s358
      %p360 = scmp.eq.s32.totalorder %s34, 0
      %p361 = por %p359, %p360
      %p362 = scmp.le.s32.totalorder 1, %s28
      %p363 = scmp.lt.s32.totalorder %s28, 3
      %p364 = pnand %p362, %p363
      %p365 = pneg %p364
      // Predicated region
      $region9: #{tpu_custom_call.1} parent=5 // pred_check
        _
      $region10: #{tpu_custom_call.1} parent=5 // pred_check_branch
        %367 = sbr.rel (%p364) target = $region12
      $region11: #{tpu_custom_call.1} parent=5 // pred_region
        %s368 = ssub.s32 %s28, 1
        // Predicated region
        $region13: #{tpu_custom_call.1} parent=11 // pred_check
          %p369 = pneg %p115
        $region14: #{tpu_custom_call.1} parent=11 // pred_check_branch
          %371 = sbr.rel (%p369) target = $region16
        $region15: #{tpu_custom_call.1} parent=11 // pred_region
          _
        $region16: #{tpu_custom_call.1} parent=11 // pred_fallthru
          _
        // Predicated region
        $region17: #{tpu_custom_call.1} parent=11 // pred_check
          %p372 = pneg %p136
        $region18: #{tpu_custom_call.1} parent=11 // pred_check_branch
          %374 = sbr.rel (%p372) target = $region20
        $region19: #{tpu_custom_call.1} parent=11 // pred_region
          _
        $region20: #{tpu_custom_call.1} parent=11 // pred_fallthru
          _
        // Predicated region
        $region21: #{tpu_custom_call.1} parent=11 // pred_check
          %p375 = pneg %p157
        $region22: #{tpu_custom_call.1} parent=11 // pred_check_branch
          %377 = sbr.rel (%p375) target = $region24
        $region23: #{tpu_custom_call.1} parent=11 // pred_region
          _
        $region24: #{tpu_custom_call.1} parent=11 // pred_fallthru
          _
        // Predicated region
        $region25: #{tpu_custom_call.1} parent=11 // pred_check
          %p378 = pneg %p178
        $region26: #{tpu_custom_call.1} parent=11 // pred_check_branch
          %380 = sbr.rel (%p378) target = $region28
        $region27: #{tpu_custom_call.1} parent=11 // pred_region
          _
        $region28: #{tpu_custom_call.1} parent=11 // pred_fallthru
          _
        // Predicated region
        $region29: #{tpu_custom_call.1} parent=11 // pred_check
          %p381 = pneg %p199
        $region30: #{tpu_custom_call.1} parent=11 // pred_check_branch
          %383 = sbr.rel (%p381) target = $region32
        $region31: #{tpu_custom_call.1} parent=11 // pred_region
          _
        $region32: #{tpu_custom_call.1} parent=11 // pred_fallthru
          _
        // Predicated region
        $region33: #{tpu_custom_call.1} parent=11 // pred_check
          %p384 = pneg %p220
        $region34: #{tpu_custom_call.1} parent=11 // pred_check_branch
          %386 = sbr.rel (%p384) target = $region36
        $region35: #{tpu_custom_call.1} parent=11 // pred_region
          _
        $region36: #{tpu_custom_call.1} parent=11 // pred_fallthru
          _
      $region12: #{tpu_custom_call.1} parent=5 // pred_fallthru
        _
      %p387 = scmp.lt.s32.totalorder %s28, 2
      // Predicated region
      $region37: #{tpu_custom_call.1} parent=5 // pred_check
        %p388 = pneg %p387
      $region38: #{tpu_custom_call.1} parent=5 // pred_check_branch
        %390 = sbr.rel (%p388) target = $region40
      $region39: #{tpu_custom_call.1} parent=5 // pred_region
        // Predicated region
        $region41: #{tpu_custom_call.1} parent=39 // pred_check
          %p391 = pneg %p62
        $region42: #{tpu_custom_call.1} parent=39 // pred_check_branch
          %393 = sbr.rel (%p391) target = $region44
        $region43: #{tpu_custom_call.1} parent=39 // pred_region
          %p394 = scmp.lt.s32.totalorder %s35, 1
          %s395 = scalar_select %p394, %s35, 1
          %p396 = scmp.lt.s32.totalorder %s36, 0
          %s397 = scalar_select %p396, %s36, 0
          %s398 = sadd.s32 %s397, %s395
          %s399 = smul.addr %s398, 8
          %s400 = scalar_lea.vmem %s0, %s399
        $region44: #{tpu_custom_call.1} parent=39 // pred_fallthru
          _
        // Predicated region
        $region45: #{tpu_custom_call.1} parent=39 // pred_check
          %p401 = pneg %p88
        $region46: #{tpu_custom_call.1} parent=39 // pred_check_branch
          %403 = sbr.rel (%p401) target = $region48
        $region47: #{tpu_custom_call.1} parent=39 // pred_region
          %p404 = scmp.lt.s32.totalorder %s35, 1
          %s405 = scalar_select %p404, %s35, 1
          %s406 = smul.addr %s405, 2
          %s407 = smul.addr %s406, 8
          %s408 = scalar_lea.vmem %s1, %s407
        $region48: #{tpu_custom_call.1} parent=39 // pred_fallthru
          _
        // Predicated region
        $region49: #{tpu_custom_call.1} parent=39 // pred_check
          %p409 = pneg %p240
        $region50: #{tpu_custom_call.1} parent=39 // pred_check_branch
          %411 = sbr.rel (%p409) target = $region52
        $region51: #{tpu_custom_call.1} parent=39 // pred_region
          %p412 = scmp.lt.s32.totalorder %s35, 1
          %s413 = scalar_select %p412, %s35, 1
          %s414 = scalar_lea.vmem %s8, %s413
        $region52: #{tpu_custom_call.1} parent=39 // pred_fallthru
          _
      $region40: #{tpu_custom_call.1} parent=5 // pred_fallthru
        _
      %p415 = scmp.le.s32.totalorder 1, %s28
      %p416 = scmp.lt.s32.totalorder %s28, 3
      %p417 = pnand %p415, %p416
      %p418 = pneg %p417
      // Predicated region
      $region53: #{tpu_custom_call.1} parent=5 // pred_check
        _
      $region54: #{tpu_custom_call.1} parent=5 // pred_check_branch
        %420 = sbr.rel (%p417) target = $region56
      $region55: #{tpu_custom_call.1} parent=5 // pred_region
        %s421 = ssub.s32 %s28, 1
        %p422 = scmp.lt.s32.totalorder %s37, 1
        %s423 = scalar_select %p422, %s37, 1
        %p424 = scmp.lt.s32.totalorder %s38, 0
        %s425 = scalar_select %p424, %s38, 0
        %s426 = sadd.s32 %s425, %s423
        %s427 = smul.addr %s426, 8
        %s428 = scalar_lea.vmem %s0, %s427
        %p429 = pneg %p68
        %p430 = pneg %p65
        %p431 = scmp.lt.s32.totalorder %s37, 1
        %s432 = scalar_select %p431, %s37, 1
        %s433 = smul.addr %s432, 2
        %s434 = smul.addr %s433, 8
        %s435 = scalar_lea.vmem %s1, %s434
        %p436 = pneg %p94
        %p437 = pneg %p91
        %p438 = pneg %p115
        %p439 = pneg %p112
        %p440 = pneg %p136
        %p441 = pneg %p133
        %p442 = pneg %p157
        %p443 = pneg %p154
        %p444 = pneg %p178
        %p445 = pneg %p175
        %p446 = pneg %p199
        %p447 = pneg %p196
        %p448 = pneg %p220
        %p449 = pneg %p217
        %p450 = scmp.lt.s32.totalorder %s37, 1
        %s451 = scalar_select %p450, %s37, 1
        %s452 = scalar_lea.vmem %s8, %s451
        %p453 = pneg %p246
        %p454 = pneg %p243
        %p455 = pneg %p274
        %p456 = pneg %p271
        %s457 = sand.u32 %s261, 1
        %s458 = scalar_lea.sflag [#allocation3], %s457
        %s459 = sand.u32 %s261, 1
        %s460 = smul.addr %s459, 8
        %s461 = scalar_lea.vmem [#allocation2], %s460
        %p462 = pneg %p302
        %p463 = pneg %p299
        %s464 = sand.u32 %s33, 1
        %s465 = scalar_lea.sflag [#allocation5], %s464
        %s466 = sand.u32 %s289, 1
        %s467 = smul.addr %s466, 32
        %s468 = scalar_lea.vmem [#allocation4], %s467
        %p469 = pneg %p328
        %p470 = pneg %p325
        %s471 = sand.u32 %s33, 1
        %s472 = scalar_lea.sflag [#allocation5], %s471
        %s473 = sand.u32 %s315, 1
        %s474 = smul.addr %s473, 16
        %s475 = scalar_lea.vmem [#allocation6], %s474
        %p476 = pneg %p354
        %p477 = pneg %p351
        %s478 = sand.u32 %s341, 1
        %s479 = scalar_lea.sflag [#allocation8], %s478
        %s480 = sand.u32 %s341, 1
        %s481 = smul.addr %s480, 16
        %s482 = scalar_lea.vmem [#allocation7], %s481
        %p483 = scmp.lt.s32.totalorder %s37, 1
        %s484 = scalar_select %p483, %s37, 1
        %p485 = scmp.lt.s32.totalorder %s38, 0
        %s486 = scalar_select %p485, %s38, 0
        %s487 = sadd.s32 %s486, %s484
        %s488 = smul.addr %s487, 8
        %s489 = scalar_lea.vmem %s0, %s488
        %p490 = scmp.lt.s32.totalorder %s37, 1
        %s491 = scalar_select %p490, %s37, 1
        %s492 = smul.addr %s491, 2
        %s493 = smul.addr %s492, 8
        %s494 = scalar_lea.vmem %s1, %s493
        %p495 = scmp.lt.s32.totalorder %s37, 1
        %s496 = scalar_select %p495, %s37, 1
        %s497 = scalar_lea.vmem %s8, %s496
        %p498 = scmp.eq.s32.totalorder %s38, 0
        // Predicated region
        $region57: #{tpu_custom_call.1} parent=55 // pred_check
          %p499 = pneg %p498
        $region58: #{tpu_custom_call.1} parent=55 // pred_check_branch
          %501 = sbr.rel (%p499) target = $region60
        $region59: #{tpu_custom_call.1} parent=55 // pred_region
          %v502 = vld [vmem:[%s494] sm:$0xff]
          %v503 = vld [vmem:[%s494 + $0x8] sm:$0xff]
          %v504 = vld [vmem:[%s4] sm:$0xff]
          %v505 = vld [vmem:[%s4 + $0x8] sm:$0xff]
          %v506 = vld [vmem:[%s4 + $0x10] sm:$0xff]
          %v507 = vld [vmem:[%s4 + $0x18] sm:$0xff]
          %v508 = vld [vmem:[%s4 + $0x20] sm:$0xff]
          %v509 = vld [vmem:[%s4 + $0x28] sm:$0xff]
          %v510 = vld [vmem:[%s5] sm:$0x1]
          %v512 = vperm.slane %v510, 0
          %vm514 = vcmask 392192
          %v516 = vsel %vm514, %v502, 0
          %v519 = vsel %vm514, %v503, 0
          %521 = vmatpush.msra.mxu0 0.0
          %522 = vmatpush.msra.mxu0 0.0
          %523 = vmatpush.msra.mxu0 0.0
          %524 = vmatpush.msra.mxu0 0.0
          %525 = vmatpush.msra.mxu0 0.0
          %526 = vmatpush.msra.mxu0 0.0
          %527 = vmatpush.msra.mxu0 0.0
          %528 = vmatpush.msra.mxu0 0.0
          %529 = vmatpush.msra.mxu0 0.0
          %530 = vmatpush.msra.mxu0 0.0
          %531 = vmatpush.msra.mxu0 %v509
          %532 = vmatpush.msra.mxu0 %v508
          %533 = vmatpush.msra.mxu0 %v507
          %534 = vmatpush.msra.mxu0 %v506
          %535 = vmatpush.msra.mxu0 %v505
          %536 = vmatpush.msra.mxu0 %v504
          %537 = vmatmul.f32.gmra.mxu0 %v516
          %v538 = vpop.f32.mrf.mxu0
          %v539 = vadd.f32 %v512, %v538
          %540 = vmatmul.f32.gmra.mxu0 %v519
          %v541 = vpop.f32.mrf.mxu0
          %v542 = vadd.f32 %v512, %v541
          %543 = vdwg.mxu0
          %vm544 = vcmask 261120
          %545 = vst.msk [vmem:[%s475] sm:$0xff] %vm544, %v539
          %546 = vst.msk [vmem:[%s475 + $0x8] sm:$0xff] %vm544, %v542
          %v547 = vld [vmem:[%s6] sm:$0xff]
          %v548 = vld [vmem:[%s6 + $0x8] sm:$0xff]
          %v549 = vld [vmem:[%s6 + $0x10] sm:$0xff]
          %v550 = vld [vmem:[%s6 + $0x18] sm:$0xff]
          %v551 = vld [vmem:[%s6 + $0x20] sm:$0xff]
          %v552 = vld [vmem:[%s6 + $0x28] sm:$0xff]
          %v553 = vld [vmem:[%s7] sm:$0x1]
          %v555 = vperm.slane %v553, 0
          %557 = vmatpush.msra.mxu0 0.0
          %558 = vmatpush.msra.mxu0 0.0
          %559 = vmatpush.msra.mxu0 0.0
          %560 = vmatpush.msra.mxu0 0.0
          %561 = vmatpush.msra.mxu0 0.0
          %562 = vmatpush.msra.mxu0 0.0
          %563 = vmatpush.msra.mxu0 0.0
          %564 = vmatpush.msra.mxu0 0.0
          %565 = vmatpush.msra.mxu0 0.0
          %566 = vmatpush.msra.mxu0 0.0
          %567 = vmatpush.msra.mxu0 %v552
          %568 = vmatpush.msra.mxu0 %v551
          %569 = vmatpush.msra.mxu0 %v550
          %570 = vmatpush.msra.mxu0 %v549
          %571 = vmatpush.msra.mxu0 %v548
          %572 = vmatpush.msra.mxu0 %v547
          %573 = vmatmul.f32.gmra.mxu0 %v516
          %v574 = vpop.f32.mrf.mxu0
          %v575 = vadd.f32 %v555, %v574
          %576 = vmatmul.f32.gmra.mxu0 %v519
          %v577 = vpop.f32.mrf.mxu0
          %v578 = vadd.f32 %v555, %v577
          %579 = vdwg.mxu0
          %580 = vst.msk [vmem:[%s482] sm:$0xff] %vm544, %v575
          %581 = vst.msk [vmem:[%s482 + $0x8] sm:$0xff] %vm544, %v578
        $region60: #{tpu_custom_call.1} parent=55 // pred_fallthru
          _
        %v582 = vld [vmem:[%s489] sm:$0xff]
        %v583 = vld [vmem:[%s2] sm:$0xff]
        %v584 = vld [vmem:[%s2 + $0x8] sm:$0xff]
        %v585 = vld [vmem:[%s2 + $0x10] sm:$0xff]
        %v586 = vld [vmem:[%s2 + $0x18] sm:$0xff]
        %v587 = vld [vmem:[%s3] sm:$0x1]
        %v589 = vperm.slane %v587, 0
        %vm591 = vcmask 261120
        %v593 = vsel %vm591, %v582, 0
        %595 = vmatpush.msra.mxu0 0.0
        %596 = vmatpush.msra.mxu0 0.0
        %597 = vmatpush.msra.mxu0 0.0
        %598 = vmatpush.msra.mxu0 0.0
        %599 = vmatpush.msra.mxu0 0.0
        %600 = vmatpush.msra.mxu0 0.0
        %601 = vmatpush.msra.mxu0 0.0
        %602 = vmatpush.msra.mxu0 0.0
        %603 = vmatpush.msra.mxu0 0.0
        %604 = vmatpush.msra.mxu0 0.0
        %605 = vmatpush.msra.mxu0 0.0
        %606 = vmatpush.msra.mxu0 0.0
        %607 = vmatpush.msra.mxu0 %v586
        %608 = vmatpush.msra.mxu0 %v585
        %609 = vmatpush.msra.mxu0 %v584
        %610 = vmatpush.msra.mxu0 %v583
        %611 = vmatmul.f32.gmra.mxu0 %v593
        %v612 = vpop.f32.mrf.mxu0
        %v613 = vadd.f32 %v589, %v612
        %614 = vdwg.mxu0
        %v615 = vmul.f32 %v613, 0.35355338
        %v616 = vld [vmem:[%s475] sm:$0xff]
        %v617 = vld [vmem:[%s475 + $0x8] sm:$0xff]
        %v618 = vld [vmem:[%s482] sm:$0xff]
        %v619 = vld [vmem:[%s482 + $0x8] sm:$0xff]
        %v620 = vld [vmem:[%s497] sm:$0x1]
        %v622 = vperm.slane %v620, 0
        %vm624 = vcmask 64512
        %v626 = vsel %vm624, %v615, 0
        %v629 = vsel %vm624, %v616, 0
        %v632 = vsel %vm624, %v617, 0
        %634 = vmatpush.xpose.msra.mxu0 0.0
        %635 = vmatpush.xpose.msra.mxu0 0.0
        %636 = vmatpush.xpose.msra.mxu0 0.0
        %637 = vmatpush.xpose.msra.mxu0 0.0
        %638 = vmatpush.xpose.msra.mxu0 0.0
        %639 = vmatpush.xpose.msra.mxu0 0.0
        %640 = vmatpush.xpose.msra.mxu0 0.0
        %641 = vmatpush.xpose.msra.mxu0 0.0
        %642 = vmatpush.xpose.msra.mxu0 0.0
        %643 = vmatpush.xpose.msra.mxu0 0.0
        %644 = vmatpush.xpose.msra.mxu0 0.0
        %645 = vmatpush.xpose.msra.mxu0 0.0
        %646 = vmatpush.xpose.msra.mxu0 0.0
        %647 = vmatpush.xpose.msra.mxu0 0.0
        %648 = vmatpush.xpose.msra.mxu0 %v632
        %649 = vmatpush.xpose.msra.mxu0 %v629
        %650 = vmatmul.f32.gmra.mxu0 %v626
        %v651 = vpop.f32.mrf.mxu0
        %v652 = vadd.f32 %v622, %v651
        %653 = vdwg.mxu0
        %vm654 = vcmask 130048
        %v655 = vsel %vm654, %v652, -inf
        %656 = vmax.xlane.f32.xlu0 %v655
        %v657 = vpop.xlane.xlu0 %656
        %v658 = vsub.f32 %v652, %v657
        %v659 = vmul.f32 %v658, 1.442695
        %v660 = vpow.pop %v659
        %v661 = vsel %vm654, %v660, 0.0
        %662 = vadd.xlane.f32.xlu0 %v661
        %v663 = vpop.xlane.xlu0 %662
        %v664 = vrcp.pop %v663
        %v665 = vmul.f32 %v660, %v664
        %666 = vst.msk [vmem:[%s468] sm:$0xff] %vm654, %v665
        %v668 = vsel %vm654, %v665, 0
        %670 = vmatpush.msra.mxu0 0.0
        %671 = vmatpush.msra.mxu0 0.0
        %672 = vmatpush.msra.mxu0 0.0
        %673 = vmatpush.msra.mxu0 0.0
        %674 = vmatpush.msra.mxu0 0.0
        %675 = vmatpush.msra.mxu0 0.0
        %676 = vmatpush.msra.mxu0 0.0
        %677 = vmatpush.msra.mxu0 0.0
        %678 = vmatpush.msra.mxu0 0.0
        %679 = vmatpush.msra.mxu0 0.0
        %680 = vmatpush.msra.mxu0 0.0
        %681 = vmatpush.msra.mxu0 0.0
        %682 = vmatpush.msra.mxu0 0.0
        %683 = vmatpush.msra.mxu0 0.0
        %684 = vmatpush.msra.mxu0 %v619
        %685 = vmatpush.msra.mxu0 %v618
        %686 = vmatmul.f32.gmra.mxu0 %v668
        %v687 = vpop.f32.mrf.mxu0
        %v688 = vadd.f32 0.0, %v687
        %689 = vdwg.mxu0
        %690 = vrot.lane.b32.xlu0 %v615, 120
        %v691 = vpop.permute.xlu0 %690
        %692 = vrot.lane.b32.xlu0 %v616, 120
        %v693 = vpop.permute.xlu0 %692
        %694 = vrot.lane.b32.xlu0 %v617, 120
        %v695 = vpop.permute.xlu0 %694
        %v696 = vsel %vm624, %v691, 0
        %v698 = vsel %vm624, %v693, 0
        %v700 = vsel %vm624, %v695, 0
        %702 = vmatpush.xpose.msra.mxu0 0.0
        %703 = vmatpush.xpose.msra.mxu0 0.0
        %704 = vmatpush.xpose.msra.mxu0 0.0
        %705 = vmatpush.xpose.msra.mxu0 0.0
        %706 = vmatpush.xpose.msra.mxu0 0.0
        %707 = vmatpush.xpose.msra.mxu0 0.0
        %708 = vmatpush.xpose.msra.mxu0 0.0
        %709 = vmatpush.xpose.msra.mxu0 0.0
        %710 = vmatpush.xpose.msra.mxu0 0.0
        %711 = vmatpush.xpose.msra.mxu0 0.0
        %712 = vmatpush.xpose.msra.mxu0 0.0
        %713 = vmatpush.xpose.msra.mxu0 0.0
        %714 = vmatpush.xpose.msra.mxu0 0.0
        %715 = vmatpush.xpose.msra.mxu0 0.0
        %716 = vmatpush.xpose.msra.mxu0 %v700
        %717 = vmatpush.xpose.msra.mxu0 %v698
        %718 = vmatmul.f32.gmra.mxu0 %v696
        %v719 = vpop.f32.mrf.mxu0
        %v720 = vadd.f32 %v622, %v719
        %721 = vdwg.mxu0
        %v722 = vsel %vm654, %v720, -inf
        %723 = vmax.xlane.f32.xlu0 %v722
        %v724 = vpop.xlane.xlu0 %723
        %v725 = vsub.f32 %v720, %v724
        %v726 = vmul.f32 %v725, 1.442695
        %v727 = vpow.pop %v726
        %v728 = vsel %vm654, %v727, 0.0
        %729 = vadd.xlane.f32.xlu0 %v728
        %v730 = vpop.xlane.xlu0 %729
        %v731 = vrcp.pop %v730
        %v732 = vmul.f32 %v727, %v731
        %s733 = scalar_lea.vmem %s468, 8 [#allocation4]
        %734 = vst.msk [vmem:[%s733] sm:$0xff] %vm654, %v732
        %737 = vrot.lane.b32.xlu0 %v618, 120
        %v738 = vpop.permute.xlu0 %737
        %739 = vrot.lane.b32.xlu0 %v619, 120
        %v740 = vpop.permute.xlu0 %739
        %v744 = vsel %vm654, %v732, 0
        %746 = vmatpush.msra.mxu0 0.0
        %747 = vmatpush.msra.mxu0 0.0
        %748 = vmatpush.msra.mxu0 0.0
        %749 = vmatpush.msra.mxu0 0.0
        %750 = vmatpush.msra.mxu0 0.0
        %751 = vmatpush.msra.mxu0 0.0
        %752 = vmatpush.msra.mxu0 0.0
        %753 = vmatpush.msra.mxu0 0.0
        %754 = vmatpush.msra.mxu0 0.0
        %755 = vmatpush.msra.mxu0 0.0
        %756 = vmatpush.msra.mxu0 0.0
        %757 = vmatpush.msra.mxu0 0.0
        %758 = vmatpush.msra.mxu0 0.0
        %759 = vmatpush.msra.mxu0 0.0
        %760 = vmatpush.msra.mxu0 %v740
        %761 = vmatpush.msra.mxu0 %v738
        %762 = vmatmul.f32.gmra.mxu0 %v744
        %v763 = vpop.f32.mrf.mxu0
        %v764 = vadd.f32 0.0, %v763
        %765 = vdwg.mxu0
        %766 = vrot.lane.b32.xlu0 %v615, 112
        %v767 = vpop.permute.xlu0 %766
        %768 = vrot.lane.b32.xlu0 %v616, 112
        %v769 = vpop.permute.xlu0 %768
        %770 = vrot.lane.b32.xlu0 %v617, 112
        %v771 = vpop.permute.xlu0 %770
        %v772 = vsel %vm624, %v767, 0
        %v774 = vsel %vm624, %v769, 0
        %v776 = vsel %vm624, %v771, 0
        %778 = vmatpush.xpose.msra.mxu0 0.0
        %779 = vmatpush.xpose.msra.mxu0 0.0
        %780 = vmatpush.xpose.msra.mxu0 0.0
        %781 = vmatpush.xpose.msra.mxu0 0.0
        %782 = vmatpush.xpose.msra.mxu0 0.0
        %783 = vmatpush.xpose.msra.mxu0 0.0
        %784 = vmatpush.xpose.msra.mxu0 0.0
        %785 = vmatpush.xpose.msra.mxu0 0.0
        %786 = vmatpush.xpose.msra.mxu0 0.0
        %787 = vmatpush.xpose.msra.mxu0 0.0
        %788 = vmatpush.xpose.msra.mxu0 0.0
        %789 = vmatpush.xpose.msra.mxu0 0.0
        %790 = vmatpush.xpose.msra.mxu0 0.0
        %791 = vmatpush.xpose.msra.mxu0 0.0
        %792 = vmatpush.xpose.msra.mxu0 %v776
        %793 = vmatpush.xpose.msra.mxu0 %v774
        %794 = vmatmul.f32.gmra.mxu0 %v772
        %v795 = vpop.f32.mrf.mxu0
        %v796 = vadd.f32 %v622, %v795
        %797 = vdwg.mxu0
        %v798 = vsel %vm654, %v796, -inf
        %799 = vmax.xlane.f32.xlu0 %v798
        %v800 = vpop.xlane.xlu0 %799
        %v801 = vsub.f32 %v796, %v800
        %v802 = vmul.f32 %v801, 1.442695
        %v803 = vpow.pop %v802
        %v804 = vsel %vm654, %v803, 0.0
        %805 = vadd.xlane.f32.xlu0 %v804
        %v806 = vpop.xlane.xlu0 %805
        %v807 = vrcp.pop %v806
        %v808 = vmul.f32 %v803, %v807
        %s809 = scalar_lea.vmem %s468, 16 [#allocation4]
        %810 = vst.msk [vmem:[%s809] sm:$0xff] %vm654, %v808
        %811 = vrot.lane.b32.xlu0 %v618, 112
        %v812 = vpop.permute.xlu0 %811
        %813 = vrot.lane.b32.xlu0 %v619, 112
        %v814 = vpop.permute.xlu0 %813
        %v818 = vsel %vm654, %v808, 0
        %820 = vmatpush.msra.mxu0 0.0
        %821 = vmatpush.msra.mxu0 0.0
        %822 = vmatpush.msra.mxu0 0.0
        %823 = vmatpush.msra.mxu0 0.0
        %824 = vmatpush.msra.mxu0 0.0
        %825 = vmatpush.msra.mxu0 0.0
        %826 = vmatpush.msra.mxu0 0.0
        %827 = vmatpush.msra.mxu0 0.0
        %828 = vmatpush.msra.mxu0 0.0
        %829 = vmatpush.msra.mxu0 0.0
        %830 = vmatpush.msra.mxu0 0.0
        %831 = vmatpush.msra.mxu0 0.0
        %832 = vmatpush.msra.mxu0 0.0
        %833 = vmatpush.msra.mxu0 0.0
        %834 = vmatpush.msra.mxu0 %v814
        %835 = vmatpush.msra.mxu0 %v812
        %836 = vmatmul.f32.gmra.mxu0 %v818
        %v837 = vpop.f32.mrf.mxu0
        %v838 = vadd.f32 0.0, %v837
        %839 = vdwg.mxu0
        %840 = vrot.lane.b32.xlu0 %v615, 104
        %v841 = vpop.permute.xlu0 %840
        %842 = vrot.lane.b32.xlu0 %v616, 104
        %v843 = vpop.permute.xlu0 %842
        %844 = vrot.lane.b32.xlu0 %v617, 104
        %v845 = vpop.permute.xlu0 %844
        %v846 = vsel %vm624, %v841, 0
        %v848 = vsel %vm624, %v843, 0
        %v850 = vsel %vm624, %v845, 0
        %852 = vmatpush.xpose.msra.mxu0 0.0
        %853 = vmatpush.xpose.msra.mxu0 0.0
        %854 = vmatpush.xpose.msra.mxu0 0.0
        %855 = vmatpush.xpose.msra.mxu0 0.0
        %856 = vmatpush.xpose.msra.mxu0 0.0
        %857 = vmatpush.xpose.msra.mxu0 0.0
        %858 = vmatpush.xpose.msra.mxu0 0.0
        %859 = vmatpush.xpose.msra.mxu0 0.0
        %860 = vmatpush.xpose.msra.mxu0 0.0
        %861 = vmatpush.xpose.msra.mxu0 0.0
        %862 = vmatpush.xpose.msra.mxu0 0.0
        %863 = vmatpush.xpose.msra.mxu0 0.0
        %864 = vmatpush.xpose.msra.mxu0 0.0
        %865 = vmatpush.xpose.msra.mxu0 0.0
        %866 = vmatpush.xpose.msra.mxu0 %v850
        %867 = vmatpush.xpose.msra.mxu0 %v848
        %868 = vmatmul.f32.gmra.mxu0 %v846
        %v869 = vpop.f32.mrf.mxu0
        %v870 = vadd.f32 %v622, %v869
        %871 = vdwg.mxu0
        %v872 = vsel %vm654, %v870, -inf
        %873 = vmax.xlane.f32.xlu0 %v872
        %v874 = vpop.xlane.xlu0 %873
        %v875 = vsub.f32 %v870, %v874
        %v876 = vmul.f32 %v875, 1.442695
        %v877 = vpow.pop %v876
        %v878 = vsel %vm654, %v877, 0.0
        %879 = vadd.xlane.f32.xlu0 %v878
        %v880 = vpop.xlane.xlu0 %879
        %v881 = vrcp.pop %v880
        %v882 = vmul.f32 %v877, %v881
        %s883 = scalar_lea.vmem %s468, 24 [#allocation4]
        %884 = vst.msk [vmem:[%s883] sm:$0xff] %vm654, %v882
        %885 = vrot.lane.b32.xlu0 %v618, 104
        %v886 = vpop.permute.xlu0 %885
        %887 = vrot.lane.b32.xlu0 %v619, 104
        %v888 = vpop.permute.xlu0 %887
        %v892 = vsel %vm654, %v882, 0
        %894 = vmatpush.msra.mxu0 0.0
        %895 = vmatpush.msra.mxu0 0.0
        %896 = vmatpush.msra.mxu0 0.0
        %897 = vmatpush.msra.mxu0 0.0
        %898 = vmatpush.msra.mxu0 0.0
        %899 = vmatpush.msra.mxu0 0.0
        %900 = vmatpush.msra.mxu0 0.0
        %901 = vmatpush.msra.mxu0 0.0
        %902 = vmatpush.msra.mxu0 0.0
        %903 = vmatpush.msra.mxu0 0.0
        %904 = vmatpush.msra.mxu0 0.0
        %905 = vmatpush.msra.mxu0 0.0
        %906 = vmatpush.msra.mxu0 0.0
        %907 = vmatpush.msra.mxu0 0.0
        %908 = vmatpush.msra.mxu0 %v888
        %909 = vmatpush.msra.mxu0 %v886
        %910 = vmatmul.f32.gmra.mxu0 %v892
        %v911 = vpop.f32.mrf.mxu0
        %v912 = vadd.f32 0.0, %v911
        %913 = vdwg.mxu0
        %915 = vrot.lane.b32.xlu0 %v764, 8
        %v916 = vpop.permute.xlu0 %915
        %919 = vrot.lane.b32.xlu0 %v838, 16
        %v920 = vpop.permute.xlu0 %919
        %923 = vrot.lane.b32.xlu0 %v912, 24
        %v924 = vpop.permute.xlu0 %923
        %v926 = vsel %vm624, %v688, %v916
        %v927 = vsel %vm654, %v926, %v920
        %vm928 = vcmask 195584
        %v929 = vsel %vm928, %v927, %v924
        %930 = vst.msk [vmem:[%s461] sm:$0xff] %vm591, %v929
        %s931 = sand.u32 %s261, 1
        %s932 = scalar_lea.sflag [#allocation3], %s931
        %s933 = sand.u32 %s261, 1
        %s934 = smul.addr %s933, 8
        %s935 = scalar_lea.vmem [#allocation2], %s934
        %s936 = sand.u32 %s33, 1
        %s937 = scalar_lea.sflag [#allocation5], %s936
        %s938 = sand.u32 %s289, 1
        %s939 = smul.addr %s938, 32
        %s940 = scalar_lea.vmem [#allocation4], %s939
        %s941 = sand.u32 %s33, 1
        %s942 = scalar_lea.sflag [#allocation5], %s941
        %s943 = sand.u32 %s315, 1
        %s944 = smul.addr %s943, 16
        %s945 = scalar_lea.vmem [#allocation6], %s944
        %s946 = sand.u32 %s341, 1
        %s947 = scalar_lea.sflag [#allocation8], %s946
        %s948 = sand.u32 %s341, 1
        %s949 = smul.addr %s948, 16
        %s950 = scalar_lea.vmem [#allocation7], %s949
        // Predicated region
        $region61: #{tpu_custom_call.1} parent=55 // pred_check
          %p951 = pneg %p271
        $region62: #{tpu_custom_call.1} parent=55 // pred_check_branch
          %953 = sbr.rel (%p951) target = $region64
        $region63: #{tpu_custom_call.1} parent=55 // pred_region
          %955 = vsyncadd %s932, 0
          %s956 = sadd.s32 %s38, %s37
          %s957 = smul.addr %s956, 8
          %s958 = scalar_lea.hbm %s9, %s957
          %s960 = sshll.u32 %s935, 4
          %s961 = int_to_ptr.vmem [resolvable:$true] %s960
          %s962 = sshll.u32 %s958, 4
          %s963 = int_to_ptr.hbm [resolvable:$true] %s962
          %965 = dma.vmem_to_hbm [thread:$0]  %s961, 128, %s963, %s932
        $region64: #{tpu_custom_call.1} parent=55 // pred_fallthru
          _
        // Predicated region
        $region65: #{tpu_custom_call.1} parent=55 // pred_check
          %p966 = pneg %p299
        $region66: #{tpu_custom_call.1} parent=55 // pred_check_branch
          %968 = sbr.rel (%p966) target = $region68
        $region67: #{tpu_custom_call.1} parent=55 // pred_region
          %970 = vsyncadd %s937, 0
          %s971 = smul.addr %s37, 4
          %s972 = sadd.s32 %s38, %s971
          %s973 = smul.addr %s972, 8
          %s974 = scalar_lea.hbm %s10, %s973
          %s975 = sshll.u32 %s940, 4
          %s976 = int_to_ptr.vmem [resolvable:$true] %s975
          %s977 = sshll.u32 %s974, 4
          %s978 = int_to_ptr.hbm [resolvable:$true] %s977
          %983 = dma.vmem_to_hbm [thread:$0]  %s976, 512, %s978, %s937, 128, 128, 8
        $region68: #{tpu_custom_call.1} parent=55 // pred_fallthru
          _
        // Predicated region
        $region69: #{tpu_custom_call.1} parent=55 // pred_check
          %p984 = pneg %p325
        $region70: #{tpu_custom_call.1} parent=55 // pred_check_branch
          %986 = sbr.rel (%p984) target = $region72
        $region71: #{tpu_custom_call.1} parent=55 // pred_region
          %988 = vsyncadd %s942, 0
          %s989 = smul.addr %s37, 2
          %s990 = smul.addr %s989, 8
          %s991 = scalar_lea.hbm %s11, %s990
          %s992 = sshll.u32 %s945, 4
          %s993 = int_to_ptr.vmem [resolvable:$true] %s992
          %s994 = sshll.u32 %s991, 4
          %s995 = int_to_ptr.hbm [resolvable:$true] %s994
          %1000 = dma.vmem_to_hbm [thread:$0]  %s993, 256, %s995, %s942, 128, 128, 8
        $region72: #{tpu_custom_call.1} parent=55 // pred_fallthru
          _
        // Predicated region
        $region73: #{tpu_custom_call.1} parent=55 // pred_check
          %p1001 = pneg %p351
        $region74: #{tpu_custom_call.1} parent=55 // pred_check_branch
          %1003 = sbr.rel (%p1001) target = $region76
        $region75: #{tpu_custom_call.1} parent=55 // pred_region
          %1005 = vsyncadd %s947, 0
          %s1006 = smul.addr %s37, 2
          %s1007 = smul.addr %s1006, 8
          %s1008 = scalar_lea.hbm %s12, %s1007
          %s1009 = sshll.u32 %s950, 4
          %s1010 = int_to_ptr.vmem [resolvable:$true] %s1009
          %s1011 = sshll.u32 %s1008, 4
          %s1012 = int_to_ptr.hbm [resolvable:$true] %s1011
          %1017 = dma.vmem_to_hbm [thread:$0]  %s1010, 256, %s1012, %s947, 128, 128, 8
        $region76: #{tpu_custom_call.1} parent=55 // pred_fallthru
          _
      $region56: #{tpu_custom_call.1} parent=5 // pred_fallthru
        _
      %p1018 = scmp.le.s32.totalorder 2, %s28
      // Predicated region
      $region77: #{tpu_custom_call.1} parent=5 // pred_check
        %p1019 = pneg %p1018
      $region78: #{tpu_custom_call.1} parent=5 // pred_check_branch
        %1021 = sbr.rel (%p1019) target = $region80
      $region79: #{tpu_custom_call.1} parent=5 // pred_region
        %s1022 = ssub.s32 %s28, 2
        // Predicated region
        $region81: #{tpu_custom_call.1} parent=79 // pred_check
          %p1023 = pneg %p277
        $region82: #{tpu_custom_call.1} parent=79 // pred_check_branch
          %1025 = sbr.rel (%p1023) target = $region84
        $region83: #{tpu_custom_call.1} parent=79 // pred_region
          %s1026 = sand.u32 %s262, 1
          %s1027 = scalar_lea.sflag [#allocation3], %s1026
          %s1028 = sand.u32 %s262, 1
          %s1029 = smul.addr %s1028, 8
          %s1030 = scalar_lea.vmem [#allocation2], %s1029
          %1032 = dma.done %s1027, 128
        $region84: #{tpu_custom_call.1} parent=79 // pred_fallthru
          _
        // Predicated region
        $region85: #{tpu_custom_call.1} parent=79 // pred_check
          %p1033 = pneg %p305
        $region86: #{tpu_custom_call.1} parent=79 // pred_check_branch
          %1035 = sbr.rel (%p1033) target = $region88
        $region87: #{tpu_custom_call.1} parent=79 // pred_region
          %s1036 = sand.u32 %s34, 1
          %s1037 = scalar_lea.sflag [#allocation5], %s1036
          %s1038 = sand.u32 %s290, 1
          %s1039 = smul.addr %s1038, 32
          %s1040 = scalar_lea.vmem [#allocation4], %s1039
          %1042 = dma.done %s1037, 512
        $region88: #{tpu_custom_call.1} parent=79 // pred_fallthru
          _
        // Predicated region
        $region89: #{tpu_custom_call.1} parent=79 // pred_check
          %p1043 = pneg %p331
        $region90: #{tpu_custom_call.1} parent=79 // pred_check_branch
          %1045 = sbr.rel (%p1043) target = $region92
        $region91: #{tpu_custom_call.1} parent=79 // pred_region
          %s1046 = sand.u32 %s34, 1
          %s1047 = scalar_lea.sflag [#allocation5], %s1046
          %s1048 = sand.u32 %s316, 1
          %s1049 = smul.addr %s1048, 16
          %s1050 = scalar_lea.vmem [#allocation6], %s1049
          %1052 = dma.done %s1047, 256
        $region92: #{tpu_custom_call.1} parent=79 // pred_fallthru
          _
        // Predicated region
        $region93: #{tpu_custom_call.1} parent=79 // pred_check
          %p1053 = pneg %p357
        $region94: #{tpu_custom_call.1} parent=79 // pred_check_branch
          %1055 = sbr.rel (%p1053) target = $region96
        $region95: #{tpu_custom_call.1} parent=79 // pred_region
          %s1056 = sand.u32 %s342, 1
          %s1057 = scalar_lea.sflag [#allocation8], %s1056
          %s1058 = sand.u32 %s342, 1
          %s1059 = smul.addr %s1058, 16
          %s1060 = scalar_lea.vmem [#allocation7], %s1059
          %1062 = dma.done %s1057, 256
        $region96: #{tpu_custom_call.1} parent=79 // pred_fallthru
          _
      $region80: #{tpu_custom_call.1} parent=5 // pred_fallthru
        _
    $region6: #{tpu_custom_call.1} parent=1 // loop_footer
      %s32 = sadd.s32 1, %s28
    $region7: #{tpu_custom_call.1} parent=1 // loop_footer_branch
      %27 = sbr.rel target = $region3
    $region8: #{tpu_custom_call.1} parent=1 // loop_exit
      _
    %1063 = vsyncpa [#allocation3], 1
    %s1064 = scalar_lea.sflag [#allocation3], 1
    %1065 = vsyncpa %s1064, 1
    %1066 = vsyncpa [#allocation5], 1
    %s1067 = scalar_lea.sflag [#allocation5], 1
    %1068 = vsyncpa %s1067, 1
    %1069 = vsyncpa [#allocation8], 1
    %s1070 = scalar_lea.sflag [#allocation8], 1
    %1071 = vsyncpa %s1070, 1

</llo_original>
